<compile_context>
chip_gen: v6e
topology: v6e:2x2x1
jax: 0.10.0
libtpu: 0.0.40
codegen_flags: <defaults>
</compile_context>

<pallas_src>
import jax
import jax.numpy as jnp
from jax.experimental import pallas as pl
from jax.experimental.pallas import tpu as pltpu


# 48 MiB scoped VMEM: safe on v7x (64 MiB physical), comfortably under v5e/v6e's 128 MiB.
_VMEM_LIMIT_BYTES = 48 * 1024 * 1024


def _round_up(n, m):
    return ((n + m - 1) // m) * m


def _pick_tile(dim, tmax, align):
    """Pick a tile for `dim`. Returns (tile, padded_dim).
    Prefers a full-extent block (dim <= tmax) or an aligned divisor of dim (no padding);
    only falls back to padding when no aligned divisor exists."""
    if dim <= tmax:
        return dim, dim
    t = (tmax // align) * align
    while t >= align:
        if dim % t == 0:
            return t, dim
        t -= align
    t = (tmax // align) * align
    return t, _round_up(dim, t)


# ----------------------------------------------------------------------------
# Tiled matmul + bias:  (M, K) @ (K, N) + b  -> (M, N)
# Used for the hoisted input projection and for the LM head.
# ----------------------------------------------------------------------------
def _matmul_bias_kernel(x_ref, w_ref, b_ref, o_ref, acc_ref):
    k = pl.program_id(2)

    @pl.when(k == 0)
    def _():
        acc_ref[...] = jnp.zeros_like(acc_ref)

    # NOTE: default MXU precision (bf16 passes for f32 inputs); pass precision=HIGHEST
    # through jnp.dot here if bit-level f32 exactness is ever required.
    acc_ref[...] += jnp.dot(x_ref[...], w_ref[...],
                            preferred_element_type=jnp.float32)

    @pl.when(k == pl.num_programs(2) - 1)
    def _():
        o_ref[...] = (acc_ref[...] + b_ref[...].astype(jnp.float32)
                      ).astype(o_ref.dtype)


def matmul_bias(x, w, b, *, out_dtype=None,
                tm_max=512, tk_max=512, tn_max=1024,
                vmem_limit_bytes=_VMEM_LIMIT_BYTES):
    """x: (M, K), w: (K, N), b: (1, N) f32.  Worst-case double-buffered working set at the
    tile maxima is ~13 MiB (f32), well under the 48 MiB scoped-VMEM limit on every gen."""
    M, K = x.shape
    K2, N = w.shape
    assert K == K2
    assert b.shape == (1, N)
    out_dtype = x.dtype if out_dtype is None else out_dtype

    tm, Mp = _pick_tile(M, tm_max, 8)
    tk, Kp = _pick_tile(K, tk_max, 128)
    tn, Np = _pick_tile(N, tn_max, 128)

    # Rare fallback paths (no aligned divisor): weights for the LM head are already
    # pre-padded in prepare_params, so in practice these pads do not fire.
    if (Mp, Kp) != (M, K):
        x = jnp.pad(x, ((0, Mp - M), (0, Kp - K)))
    if (Kp, Np) != (K, N):
        w = jnp.pad(w, ((0, Kp - K), (0, Np - N)))
    if Np != N:
        b = jnp.pad(b, ((0, 0), (0, Np - N)))

    out = pl.pallas_call(
        _matmul_bias_kernel,
        out_shape=jax.ShapeDtypeStruct((Mp, Np), out_dtype),
        grid_spec=pltpu.PrefetchScalarGridSpec(
            num_scalar_prefetch=0,
            grid=(Mp // tm, Np // tn, Kp // tk),
            in_specs=[
                pl.BlockSpec((tm, tk), lambda i, j, k: (i, k)),
                pl.BlockSpec((tk, tn), lambda i, j, k: (k, j)),
                pl.BlockSpec((1, tn), lambda i, j, k: (0, j)),
            ],
            out_specs=pl.BlockSpec((tm, tn), lambda i, j, k: (i, j)),
            scratch_shapes=[pltpu.VMEM((tm, tn), jnp.float32)],
        ),
        compiler_params=pltpu.CompilerParams(
            dimension_semantics=("parallel", "parallel", "arbitrary"),
            vmem_limit_bytes=vmem_limit_bytes),
    )(x, w, b)

    if (Mp, Np) != (M, N):
        out = out[:M, :N]
    return out


# ----------------------------------------------------------------------------
# RNN recurrence kernel: only tanh(x_proj_t + h @ W_hh^T), chunked over time.
# grid = (batch blocks [parallel], time chunks [arbitrary/sequential]).
# ----------------------------------------------------------------------------
def _make_recurrence_kernel(tc, bb, split, batch_major_out):
    """Kernel closure.  `split`: interleave two independent half-batch dot->tanh chains
    so MXU and EUP overlap.  `batch_major_out`: output block is (bb, tc, H) and stores go
    to out_ref[:, i, :] (folds the (T,B,H)->(B,T,H) transpose into the kernel)."""

    def kernel(xp_ref, h0_ref, whh_ref, out_ref, h_state):
        # xp_ref: (tc, bb, H); h0_ref: (bb, H); whh_ref: (H, H) resident;
        # out_ref: (tc, bb, H) or (bb, tc, H); h_state: (bb, H) f32 carry.
        @pl.when(pl.program_id(1) == 0)          # first time-chunk of this batch block
        def _():
            h_state[...] = h0_ref[...].astype(jnp.float32)

        if split:
            half = bb // 2

            def step(i, carry):
                ha, hb = carry
                # Two independent dot->tanh chains (MXU streams W_hh^T from VMEM; the
                # second matmul overlaps the first tanh on the EUP).
                da = jnp.dot(ha.astype(whh_ref.dtype), whh_ref[...],
                             preferred_element_type=jnp.float32)
                db = jnp.dot(hb.astype(whh_ref.dtype), whh_ref[...],
                             preferred_element_type=jnp.float32)
                na = jnp.tanh(xp_ref[i, :half].astype(jnp.float32) + da)
                nb = jnp.tanh(xp_ref[i, half:].astype(jnp.float32) + db)
                if batch_major_out:
                    out_ref[:half, i, :] = na.astype(out_ref.dtype)
                    out_ref[half:, i, :] = nb.astype(out_ref.dtype)
                else:
                    out_ref[i, :half] = na.astype(out_ref.dtype)
                    out_ref[i, half:] = nb.astype(out_ref.dtype)
                return (na, nb)

            ha, hb = jax.lax.fori_loop(0, tc, step,
                                       (h_state[:half], h_state[half:]),
                                       unroll=True)
            h_state[:half] = ha
            h_state[half:] = hb
        else:
            def step(i, h_prev):
                h_new = jnp.tanh(
                    xp_ref[i].astype(jnp.float32)
                    + jnp.dot(h_prev.astype(whh_ref.dtype), whh_ref[...],
                              preferred_element_type=jnp.float32))
                if batch_major_out:
                    out_ref[:, i, :] = h_new.astype(out_ref.dtype)
                else:
                    out_ref[i] = h_new.astype(out_ref.dtype)
                return h_new

            h_state[...] = jax.lax.fori_loop(0, tc, step, h_state[...],
                                             unroll=True)

    return kernel


def _default_b_block(B):
    # Give the "parallel" batch axis >= 2 blocks so v7x's 2 TensorCores both get
    # recurrence work; blocks stay multiples of 8 (sublane alignment).
    if B >= 16 and B % 16 == 0:
        return B // 2
    return B


def _pick_time_chunk(T, t_chunk, align):
    """Largest divisor of T that is <= t_chunk and a multiple of `align`
    (avoids padded time steps and any output slicing).  None if no such divisor."""
    cap = min(t_chunk, T)
    if cap >= T:
        return T
    for t in range(cap, 0, -1):
        if T % t == 0 and t % align == 0:
            return t
    return None


def rnn_recurrence(x_proj, h0, whh_t, *, t_chunk=16, b_block=None,
                   batch_major_out=False, vmem_limit_bytes=_VMEM_LIMIT_BYTES):
    """x_proj: (T, B, H) time-major pre-projected inputs (x @ W_ih^T + bias folded in).
    Returns (out, is_batch_major): out is (T, B, H) per-step hidden states, or (B, T, H)
    when batch_major_out could be honoured (folds the batch_first transpose in-kernel)."""
    T, B, H = x_proj.shape

    bb = _default_b_block(B) if b_block is None else min(b_block, B)
    if bb != B and (bb % 8 != 0 or B % bb != 0):
        bb = B                                  # (8,128): bb must be full B or a mult of 8
    split = (bb % 16 == 0)                      # halves stay multiples of 8

    # batch-major output block (bb, tc, H) needs tc % 8 == 0 (or tc == T).
    tc = _pick_time_chunk(T, t_chunk, 8 if batch_major_out else 1)
    if tc is None:
        batch_major_out = False
        tc = _pick_time_chunk(T, t_chunk, 1)

    if batch_major_out:
        out_shape = jax.ShapeDtypeStruct((B, T, H), x_proj.dtype)
        out_spec = pl.BlockSpec((bb, tc, H), lambda b, c: (b, c, 0))
    else:
        out_shape = jax.ShapeDtypeStruct((T, B, H), x_proj.dtype)
        out_spec = pl.BlockSpec((tc, bb, H), lambda b, c: (c, b, 0))

    kernel = _make_recurrence_kernel(tc, bb, split, batch_major_out)

    out = pl.pallas_call(
        kernel,
        out_shape=out_shape,
        grid_spec=pltpu.PrefetchScalarGridSpec(
            num_scalar_prefetch=0,
            grid=(B // bb, T // tc),
            in_specs=[
                pl.BlockSpec((tc, bb, H), lambda b, c: (c, b, 0)),   # x_proj chunk
                pl.BlockSpec((bb, H), lambda b, c: (b, 0)),          # h0 (batch block)
                pl.BlockSpec((H, H), lambda b, c: (0, 0)),           # W_hh^T (resident)
            ],
            out_specs=out_spec,
            scratch_shapes=[pltpu.VMEM((bb, H), jnp.float32)],
        ),
        compiler_params=pltpu.CompilerParams(
            # batch blocks independent (v7x 2-TC split); time chunks are the recurrence
            dimension_semantics=("parallel", "arbitrary"),
            vmem_limit_bytes=vmem_limit_bytes),
    )(x_proj, h0.astype(jnp.float32), whh_t)

    return out, batch_major_out


# ----------------------------------------------------------------------------
# Param prep (once, not per call) + full module forward
# ----------------------------------------------------------------------------
def prepare_params(params, compute_dtype=jnp.float32, tn_max=1024):
    """Convert PyTorch-layout params to kernel layout ONCE: pre-transposed weights
    ((in,H),(H,H),(H,V)), pre-summed RNN bias, biases as (1,N) f32, LM-head weight/bias
    pre-padded to a 128-multiple vocab when needed, optional bf16 weights/activations."""
    cd = compute_dtype
    V, _H = params["lin_w"].shape
    lin_w_t = params["lin_w"].T.astype(cd)                    # (H, V)
    lin_b = params["lin_b"].astype(jnp.float32).reshape(1, V)
    if V > tn_max and V % 128 != 0:
        Vp = _round_up(V, 128)                                # pad once, not per call
        lin_w_t = jnp.pad(lin_w_t, ((0, 0), (0, Vp - V)))
        lin_b = jnp.pad(lin_b, ((0, 0), (0, Vp - V)))
    return {
        "emb": params["emb"].astype(cd),
        "wih_t": [w.T.astype(cd) for w in params["wih"]],
        "whh_t": [w.T.astype(cd) for w in params["whh"]],
        "bias": [(bi + bh).astype(jnp.float32).reshape(1, -1)
                 for bi, bh in zip(params["bih"], params["bhh"])],
        "lin_w_t": lin_w_t,
        "lin_b": lin_b,
    }


def rnn_lm_forward(prep, inputs, h, *, vocab_size=None, t_chunk=16, b_block=None):
    """inputs: (B, T) int32 token ids; h: (num_layers, B, H).
    Returns (logits (B*T, V) in PyTorch batch_first row order, h_new (num_layers, B, H)).
    `vocab_size` only needs to be passed (statically) if the vocab was padded in
    prepare_params (V > 1024 and V % 128 != 0)."""
    B, T = inputs.shape
    cd = prep["emb"].dtype
    num_layers = len(prep["wih_t"])

    # Embedding gather directly in time-major order (no activation-sized transpose).
    # TODO(synk): fuse this gather into the first-layer input projection with
    # PrefetchScalarGridSpec (prefetch token ids + pl.Element row gather) for large E.
    x = jnp.take(prep["emb"], inputs.T, axis=0)               # (T, B, E)

    h_finals = []
    batch_major = False
    for l in range(num_layers):
        e_in = x.shape[-1]
        # Hoisted input projection: one big MXU matmul over all T*B rows (bias folded in).
        xp = matmul_bias(x.reshape(T * B, e_in), prep["wih_t"][l],
                         prep["bias"][l], out_dtype=cd)        # (T*B, H)
        hdim = xp.shape[-1]
        # Last layer writes (B, T, H) directly -> no XLA transpose before the LM head.
        x, batch_major = rnn_recurrence(
            xp.reshape(T, B, hdim), h[l], prep["whh_t"][l],
            t_chunk=t_chunk, b_block=b_block,
            batch_major_out=(l == num_layers - 1))
        if batch_major:
            h_finals.append(x[:, T - 1, :].astype(h.dtype))
        else:
            h_finals.append(x[T - 1].astype(h.dtype))
    h_new = jnp.stack(h_finals, axis=0)                        # (num_layers, B, H)

    # Match PyTorch batch_first: logits rows ordered (b, t).
    if batch_major:
        flat = x.reshape(B * T, -1)
    else:
        flat = jnp.transpose(x, (1, 0, 2)).reshape(B * T, -1)
    logits = matmul_bias(flat, prep["lin_w_t"], prep["lin_b"],
                         out_dtype=jnp.float32)                # (B*T, Vp)
    if vocab_size is not None and logits.shape[1] != vocab_size:
        logits = logits[:, :vocab_size]                        # only if vocab was padded
    return logits, h_new


# ----------------------------------------------------------------------------
# Pure-JAX reference (PyTorch semantics) for verification
# ----------------------------------------------------------------------------
def rnn_lm_reference(params, inputs, h):
    x = jnp.take(params["emb"], inputs, axis=0)               # (B, T, E)
    h_finals = []
    for l in range(len(params["wih"])):
        wih, whh = params["wih"][l], params["whh"][l]
        bih, bhh = params["bih"][l], params["bhh"][l]
        h_t = h[l]
        outs = []
        for t in range(x.shape[1]):
            h_t = jnp.tanh(x[:, t] @ wih.T + bih + h_t @ whh.T + bhh)
            outs.append(h_t)
        x = jnp.stack(outs, axis=1)
        h_finals.append(h_t)
    h_new = jnp.stack(h_finals, axis=0)
    out = x.reshape(x.shape[0] * x.shape[1], x.shape[2])
    logits = out @ params["lin_w"].T + params["lin_b"]
    return logits, h_new


def init_params(key, vocab_size, emb_size, hidden_size, num_layers):
    ks = list(jax.random.split(key, 3 + 4 * num_layers))
    k = 1.0 / jnp.sqrt(hidden_size)
    params = {
        "emb": jax.random.normal(ks.pop(), (vocab_size, emb_size), jnp.float32),
        "wih": [], "whh": [], "bih": [], "bhh": [],
    }
    for l in range(num_layers):
        in_dim = emb_size if l == 0 else hidden_size
        params["wih"].append(jax.random.uniform(ks.pop(), (hidden_size, in_dim),
                                                jnp.float32, -k, k))
        params["whh"].append(jax.random.uniform(ks.pop(), (hidden_size, hidden_size),
                                                jnp.float32, -k, k))
        params["bih"].append(jax.random.uniform(ks.pop(), (hidden_size,),
                                                jnp.float32, -k, k))
        params["bhh"].append(jax.random.uniform(ks.pop(), (hidden_size,),
                                                jnp.float32, -k, k))
    params["lin_w"] = jax.random.uniform(ks.pop(), (vocab_size, hidden_size),
                                         jnp.float32, -k, k)
    params["lin_b"] = jax.random.uniform(ks.pop(), (vocab_size,),
                                         jnp.float32, -k, k)
    return params


if __name__ == "__main__":
    fwd = jax.jit(rnn_lm_forward)

    # ---- toy config (module-consistent small shapes): exact-ish f32 verification ----
    vocab_size, emb_size, hidden_size, num_layers = 64, 32, 32, 2
    B, T = 2, 8
    key = jax.random.PRNGKey(0)
    kp, ki, kh = jax.random.split(key, 3)
    params = init_params(kp, vocab_size, emb_size, hidden_size, num_layers)
    inputs = jax.random.randint(ki, (B, T), 0, vocab_size, dtype=jnp.int32)
    h0 = jax.random.normal(kh, (num_layers, B, hidden_size), jnp.float32)

    prep = prepare_params(params, compute_dtype=jnp.float32)
    logits, h_new = fwd(prep, inputs, h0)
    jax.block_until_ready((logits, h_new))

    ref_logits, ref_h = rnn_lm_reference(params, inputs, h0)
    assert logits.shape == (B * T, vocab_size)
    assert h_new.shape == (num_layers, B, hidden_size)
    assert jnp.allclose(logits, ref_logits, atol=1e-4, rtol=1e-4)
    assert jnp.allclose(h_new, ref_h, atol=1e-4, rtol=1e-4)

    # bf16 production path (bf16 weights/activations, f32 accumulate & f32 tanh): sanity.
    prep_bf16 = prepare_params(params, compute_dtype=jnp.bfloat16)
    logits_bf, h_bf = fwd(prep_bf16, inputs, h0)
    jax.block_until_ready((logits_bf, h_bf))
    assert logits_bf.shape == (B * T, vocab_size)
    assert h_bf.shape == (num_layers, B, hidden_size)
    assert bool(jnp.all(jnp.isfinite(logits_bf)))

    # ---- medium config: exercises batch-block split (bb=B//2), in-step half interleave,
    # multi-chunk carry, and the in-kernel batch-major output store ----
    vocab_m, emb_m, hid_m, layers_m = 256, 128, 128, 2
    Bm, Tm = 32, 32
    km_p, km_i, km_h = jax.random.split(jax.random.PRNGKey(1), 3)
    params_m = init_params(km_p, vocab_m, emb_m, hid_m, layers_m)
    inputs_m = jax.random.randint(km_i, (Bm, Tm), 0, vocab_m, dtype=jnp.int32)
    h0_m = jax.random.normal(km_h, (layers_m, Bm, hid_m), jnp.float32)

    prep_m = prepare_params(params_m, compute_dtype=jnp.float32)
    logits_m, h_m = fwd(prep_m, inputs_m, h0_m)
    jax.block_until_ready((logits_m, h_m))
    ref_logits_m, ref_h_m = rnn_lm_reference(params_m, inputs_m, h0_m)
    assert logits_m.shape == (Bm * Tm, vocab_m)
    assert h_m.shape == (layers_m, Bm, hid_m)
    assert jnp.allclose(logits_m, ref_logits_m, atol=5e-2, rtol=5e-2)
    assert jnp.allclose(h_m, ref_h_m, atol=5e-2, rtol=5e-2)

    print("KERNEL_OK")
</pallas_src>

<mosaic_0001>
module attributes {stable_mosaic.version = 11 : i64} {
  func.func @kernel(%arg0: i32, %arg1: i32, %arg2: memref<8x2x32xf32, #tpu.memory_space<vmem>>, %arg3: memref<2x32xf32, #tpu.memory_space<vmem>>, %arg4: memref<32x32xf32, #tpu.memory_space<vmem>>, %arg5: memref<8x2x32xf32, #tpu.memory_space<vmem>>, %arg6: memref<2x32xf32, #tpu.memory_space<vmem>>) attributes {dimension_semantics = [#tpu.dimension_semantics<parallel>, #tpu.dimension_semantics<arbitrary>], iteration_bounds = array<i64: 1, 1>, scalar_prefetch = 0 : i64, scratch_operands = 1 : i64, tpu.core_type = #tpu.core_type<tc>, window_params = [{transform_indices = @transform_0, window_bounds = array<i64: 8, 2, 32>}, {transform_indices = @transform_1, window_bounds = array<i64: 2, 32>}, {pipeline_mode = #tpu.pipeline_mode<synchronous>, transform_indices = @transform_2, window_bounds = array<i64: 32, 32>}, {transform_indices = @transform_3, window_bounds = array<i64: 8, 2, 32>}]} {
    %c0_i32 = arith.constant 0 : i32
    %0 = arith.cmpi eq, %arg1, %c0_i32 : i32
    %1 = arith.extui %0 : i1 to i32
    %c0_i32_0 = arith.constant 0 : i32
    %2 = arith.cmpi ne, %1, %c0_i32_0 : i32
    scf.if %2 {
      %c0_60 = arith.constant 0 : index
      %c0_61 = arith.constant 0 : index
      %93 = vector.load %arg3[%c0_60, %c0_61] : memref<2x32xf32, #tpu.memory_space<vmem>>, vector<2x32xf32>
      %c0_62 = arith.constant 0 : index
      %c0_63 = arith.constant 0 : index
      %94 = vector.load %arg6[%c0_62, %c0_63] : memref<2x32xf32, #tpu.memory_space<vmem>>, vector<2x32xf32>
      tpu.vector_store %arg6[%c0_62, %c0_63], %93 {strides = array<i32>} : memref<2x32xf32, #tpu.memory_space<vmem>>, vector<2x32xf32>,
    } else {
    }
    %c0 = arith.constant 0 : index
    %c0_1 = arith.constant 0 : index
    %3 = vector.load %arg6[%c0, %c0_1] : memref<2x32xf32, #tpu.memory_space<vmem>>, vector<2x32xf32>
    %c0_i32_2 = arith.constant 0 : i32
    %4 = arith.index_cast %c0_i32_2 : i32 to index
    %c0_3 = arith.constant 0 : index
    %c0_4 = arith.constant 0 : index
    %5 = vector.load %arg2[%4, %c0_3, %c0_4] : memref<8x2x32xf32, #tpu.memory_space<vmem>>, vector<1x2x32xf32>
    %6 = vector.shape_cast %5 : vector<1x2x32xf32> to vector<2x32xf32>
    %c0_5 = arith.constant 0 : index
    %c0_6 = arith.constant 0 : index
    %7 = vector.load %arg4[%c0_5, %c0_6] : memref<32x32xf32, #tpu.memory_space<vmem>>, vector<32x32xf32>
    %cst = arith.constant dense<0.000000e+00> : vector<2x32xf32>
    %8 = tpu.matmul %3, %7, %cst {dimension_numbers = #tpu.dot_dimension_numbers<[1], [0], [0], [1], [0, 0, 1, 1], [], []>} : vector<2x32xf32>, vector<32x32xf32>, vector<2x32xf32> -> vector<2x32xf32>
    %9 = arith.addf %6, %8 : vector<2x32xf32>
    %10 = math.tanh %9 : vector<2x32xf32>
    %11 = arith.index_cast %c0_i32_2 : i32 to index
    %c0_7 = arith.constant 0 : index
    %c0_8 = arith.constant 0 : index
    %12 = vector.load %arg5[%11, %c0_7, %c0_8] : memref<8x2x32xf32, #tpu.memory_space<vmem>>, vector<1x2x32xf32>
    %13 = vector.shape_cast %12 : vector<1x2x32xf32> to vector<2x32xf32>
    %14 = vector.shape_cast %10 : vector<2x32xf32> to vector<1x2x32xf32>
    tpu.vector_store %arg5[%11, %c0_7, %c0_8], %14 {strides = array<i32>} : memref<8x2x32xf32, #tpu.memory_space<vmem>>, vector<1x2x32xf32>,
    %c1_i32 = arith.constant 1 : i32
    %15 = arith.index_cast %c1_i32 : i32 to index
    %c0_9 = arith.constant 0 : index
    %c0_10 = arith.constant 0 : index
    %16 = vector.load %arg2[%15, %c0_9, %c0_10] : memref<8x2x32xf32, #tpu.memory_space<vmem>>, vector<1x2x32xf32>
    %17 = vector.shape_cast %16 : vector<1x2x32xf32> to vector<2x32xf32>
    %c0_11 = arith.constant 0 : index
    %c0_12 = arith.constant 0 : index
    %18 = vector.load %arg4[%c0_11, %c0_12] : memref<32x32xf32, #tpu.memory_space<vmem>>, vector<32x32xf32>
    %cst_13 = arith.constant dense<0.000000e+00> : vector<2x32xf32>
    %19 = tpu.matmul %10, %18, %cst_13 {dimension_numbers = #tpu.dot_dimension_numbers<[1], [0], [0], [1], [0, 0, 1, 1], [], []>} : vector<2x32xf32>, vector<32x32xf32>, vector<2x32xf32> -> vector<2x32xf32>
    %20 = arith.addf %17, %19 : vector<2x32xf32>
    %21 = math.tanh %20 : vector<2x32xf32>
    %22 = arith.index_cast %c1_i32 : i32 to index
    %c0_14 = arith.constant 0 : index
    %c0_15 = arith.constant 0 : index
    %23 = vector.load %arg5[%22, %c0_14, %c0_15] : memref<8x2x32xf32, #tpu.memory_space<vmem>>, vector<1x2x32xf32>
    %24 = vector.shape_cast %23 : vector<1x2x32xf32> to vector<2x32xf32>
    %25 = vector.shape_cast %21 : vector<2x32xf32> to vector<1x2x32xf32>
    tpu.vector_store %arg5[%22, %c0_14, %c0_15], %25 {strides = array<i32>} : memref<8x2x32xf32, #tpu.memory_space<vmem>>, vector<1x2x32xf32>,
    %c2_i32 = arith.constant 2 : i32
    %26 = arith.index_cast %c2_i32 : i32 to index
    %c0_16 = arith.constant 0 : index
    %c0_17 = arith.constant 0 : index
    %27 = vector.load %arg2[%26, %c0_16, %c0_17] : memref<8x2x32xf32, #tpu.memory_space<vmem>>, vector<1x2x32xf32>
    %28 = vector.shape_cast %27 : vector<1x2x32xf32> to vector<2x32xf32>
    %c0_18 = arith.constant 0 : index
    %c0_19 = arith.constant 0 : index
    %29 = vector.load %arg4[%c0_18, %c0_19] : memref<32x32xf32, #tpu.memory_space<vmem>>, vector<32x32xf32>
    %cst_20 = arith.constant dense<0.000000e+00> : vector<2x32xf32>
    %30 = tpu.matmul %21, %29, %cst_20 {dimension_numbers = #tpu.dot_dimension_numbers<[1], [0], [0], [1], [0, 0, 1, 1], [], []>} : vector<2x32xf32>, vector<32x32xf32>, vector<2x32xf32> -> vector<2x32xf32>
    %31 = arith.addf %28, %30 : vector<2x32xf32>
    %32 = math.tanh %31 : vector<2x32xf32>
    %33 = arith.index_cast %c2_i32 : i32 to index
    %c0_21 = arith.constant 0 : index
    %c0_22 = arith.constant 0 : index
    %34 = vector.load %arg5[%33, %c0_21, %c0_22] : memref<8x2x32xf32, #tpu.memory_space<vmem>>, vector<1x2x32xf32>
    %35 = vector.shape_cast %34 : vector<1x2x32xf32> to vector<2x32xf32>
    %36 = vector.shape_cast %32 : vector<2x32xf32> to vector<1x2x32xf32>
    tpu.vector_store %arg5[%33, %c0_21, %c0_22], %36 {strides = array<i32>} : memref<8x2x32xf32, #tpu.memory_space<vmem>>, vector<1x2x32xf32>,
    %c3_i32 = arith.constant 3 : i32
    %37 = arith.index_cast %c3_i32 : i32 to index
    %c0_23 = arith.constant 0 : index
    %c0_24 = arith.constant 0 : index
    %38 = vector.load %arg2[%37, %c0_23, %c0_24] : memref<8x2x32xf32, #tpu.memory_space<vmem>>, vector<1x2x32xf32>
    %39 = vector.shape_cast %38 : vector<1x2x32xf32> to vector<2x32xf32>
    %c0_25 = arith.constant 0 : index
    %c0_26 = arith.constant 0 : index
    %40 = vector.load %arg4[%c0_25, %c0_26] : memref<32x32xf32, #tpu.memory_space<vmem>>, vector<32x32xf32>
    %cst_27 = arith.constant dense<0.000000e+00> : vector<2x32xf32>
    %41 = tpu.matmul %32, %40, %cst_27 {dimension_numbers = #tpu.dot_dimension_numbers<[1], [0], [0], [1], [0, 0, 1, 1], [], []>} : vector<2x32xf32>, vector<32x32xf32>, vector<2x32xf32> -> vector<2x32xf32>
    %42 = arith.addf %39, %41 : vector<2x32xf32>
    %43 = math.tanh %42 : vector<2x32xf32>
    %44 = arith.index_cast %c3_i32 : i32 to index
    %c0_28 = arith.constant 0 : index
    %c0_29 = arith.constant 0 : index
    %45 = vector.load %arg5[%44, %c0_28, %c0_29] : memref<8x2x32xf32, #tpu.memory_space<vmem>>, vector<1x2x32xf32>
    %46 = vector.shape_cast %45 : vector<1x2x32xf32> to vector<2x32xf32>
    %47 = vector.shape_cast %43 : vector<2x32xf32> to vector<1x2x32xf32>
    tpu.vector_store %arg5[%44, %c0_28, %c0_29], %47 {strides = array<i32>} : memref<8x2x32xf32, #tpu.memory_space<vmem>>, vector<1x2x32xf32>,
    %c4_i32 = arith.constant 4 : i32
    %48 = arith.index_cast %c4_i32 : i32 to index
    %c0_30 = arith.constant 0 : index
    %c0_31 = arith.constant 0 : index
    %49 = vector.load %arg2[%48, %c0_30, %c0_31] : memref<8x2x32xf32, #tpu.memory_space<vmem>>, vector<1x2x32xf32>
    %50 = vector.shape_cast %49 : vector<1x2x32xf32> to vector<2x32xf32>
    %c0_32 = arith.constant 0 : index
    %c0_33 = arith.constant 0 : index
    %51 = vector.load %arg4[%c0_32, %c0_33] : memref<32x32xf32, #tpu.memory_space<vmem>>, vector<32x32xf32>
    %cst_34 = arith.constant dense<0.000000e+00> : vector<2x32xf32>
    %52 = tpu.matmul %43, %51, %cst_34 {dimension_numbers = #tpu.dot_dimension_numbers<[1], [0], [0], [1], [0, 0, 1, 1], [], []>} : vector<2x32xf32>, vector<32x32xf32>, vector<2x32xf32> -> vector<2x32xf32>
    %53 = arith.addf %50, %52 : vector<2x32xf32>
    %54 = math.tanh %53 : vector<2x32xf32>
    %55 = arith.index_cast %c4_i32 : i32 to index
    %c0_35 = arith.constant 0 : index
    %c0_36 = arith.constant 0 : index
    %56 = vector.load %arg5[%55, %c0_35, %c0_36] : memref<8x2x32xf32, #tpu.memory_space<vmem>>, vector<1x2x32xf32>
    %57 = vector.shape_cast %56 : vector<1x2x32xf32> to vector<2x32xf32>
    %58 = vector.shape_cast %54 : vector<2x32xf32> to vector<1x2x32xf32>
    tpu.vector_store %arg5[%55, %c0_35, %c0_36], %58 {strides = array<i32>} : memref<8x2x32xf32, #tpu.memory_space<vmem>>, vector<1x2x32xf32>,
    %c5_i32 = arith.constant 5 : i32
    %59 = arith.index_cast %c5_i32 : i32 to index
    %c0_37 = arith.constant 0 : index
    %c0_38 = arith.constant 0 : index
    %60 = vector.load %arg2[%59, %c0_37, %c0_38] : memref<8x2x32xf32, #tpu.memory_space<vmem>>, vector<1x2x32xf32>
    %61 = vector.shape_cast %60 : vector<1x2x32xf32> to vector<2x32xf32>
    %c0_39 = arith.constant 0 : index
    %c0_40 = arith.constant 0 : index
    %62 = vector.load %arg4[%c0_39, %c0_40] : memref<32x32xf32, #tpu.memory_space<vmem>>, vector<32x32xf32>
    %cst_41 = arith.constant dense<0.000000e+00> : vector<2x32xf32>
    %63 = tpu.matmul %54, %62, %cst_41 {dimension_numbers = #tpu.dot_dimension_numbers<[1], [0], [0], [1], [0, 0, 1, 1], [], []>} : vector<2x32xf32>, vector<32x32xf32>, vector<2x32xf32> -> vector<2x32xf32>
    %64 = arith.addf %61, %63 : vector<2x32xf32>
    %65 = math.tanh %64 : vector<2x32xf32>
    %66 = arith.index_cast %c5_i32 : i32 to index
    %c0_42 = arith.constant 0 : index
    %c0_43 = arith.constant 0 : index
    %67 = vector.load %arg5[%66, %c0_42, %c0_43] : memref<8x2x32xf32, #tpu.memory_space<vmem>>, vector<1x2x32xf32>
    %68 = vector.shape_cast %67 : vector<1x2x32xf32> to vector<2x32xf32>
    %69 = vector.shape_cast %65 : vector<2x32xf32> to vector<1x2x32xf32>
    tpu.vector_store %arg5[%66, %c0_42, %c0_43], %69 {strides = array<i32>} : memref<8x2x32xf32, #tpu.memory_space<vmem>>, vector<1x2x32xf32>,
    %c6_i32 = arith.constant 6 : i32
    %70 = arith.index_cast %c6_i32 : i32 to index
    %c0_44 = arith.constant 0 : index
    %c0_45 = arith.constant 0 : index
    %71 = vector.load %arg2[%70, %c0_44, %c0_45] : memref<8x2x32xf32, #tpu.memory_space<vmem>>, vector<1x2x32xf32>
    %72 = vector.shape_cast %71 : vector<1x2x32xf32> to vector<2x32xf32>
    %c0_46 = arith.constant 0 : index
    %c0_47 = arith.constant 0 : index
    %73 = vector.load %arg4[%c0_46, %c0_47] : memref<32x32xf32, #tpu.memory_space<vmem>>, vector<32x32xf32>
    %cst_48 = arith.constant dense<0.000000e+00> : vector<2x32xf32>
    %74 = tpu.matmul %65, %73, %cst_48 {dimension_numbers = #tpu.dot_dimension_numbers<[1], [0], [0], [1], [0, 0, 1, 1], [], []>} : vector<2x32xf32>, vector<32x32xf32>, vector<2x32xf32> -> vector<2x32xf32>
    %75 = arith.addf %72, %74 : vector<2x32xf32>
    %76 = math.tanh %75 : vector<2x32xf32>
    %77 = arith.index_cast %c6_i32 : i32 to index
    %c0_49 = arith.constant 0 : index
    %c0_50 = arith.constant 0 : index
    %78 = vector.load %arg5[%77, %c0_49, %c0_50] : memref<8x2x32xf32, #tpu.memory_space<vmem>>, vector<1x2x32xf32>
    %79 = vector.shape_cast %78 : vector<1x2x32xf32> to vector<2x32xf32>
    %80 = vector.shape_cast %76 : vector<2x32xf32> to vector<1x2x32xf32>
    tpu.vector_store %arg5[%77, %c0_49, %c0_50], %80 {strides = array<i32>} : memref<8x2x32xf32, #tpu.memory_space<vmem>>, vector<1x2x32xf32>,
    %c7_i32 = arith.constant 7 : i32
    %81 = arith.index_cast %c7_i32 : i32 to index
    %c0_51 = arith.constant 0 : index
    %c0_52 = arith.constant 0 : index
    %82 = vector.load %arg2[%81, %c0_51, %c0_52] : memref<8x2x32xf32, #tpu.memory_space<vmem>>, vector<1x2x32xf32>
    %83 = vector.shape_cast %82 : vector<1x2x32xf32> to vector<2x32xf32>
    %c0_53 = arith.constant 0 : index
    %c0_54 = arith.constant 0 : index
    %84 = vector.load %arg4[%c0_53, %c0_54] : memref<32x32xf32, #tpu.memory_space<vmem>>, vector<32x32xf32>
    %cst_55 = arith.constant dense<0.000000e+00> : vector<2x32xf32>
    %85 = tpu.matmul %76, %84, %cst_55 {dimension_numbers = #tpu.dot_dimension_numbers<[1], [0], [0], [1], [0, 0, 1, 1], [], []>} : vector<2x32xf32>, vector<32x32xf32>, vector<2x32xf32> -> vector<2x32xf32>
    %86 = arith.addf %83, %85 : vector<2x32xf32>
    %87 = math.tanh %86 : vector<2x32xf32>
    %88 = arith.index_cast %c7_i32 : i32 to index
    %c0_56 = arith.constant 0 : index
    %c0_57 = arith.constant 0 : index
    %89 = vector.load %arg5[%88, %c0_56, %c0_57] : memref<8x2x32xf32, #tpu.memory_space<vmem>>, vector<1x2x32xf32>
    %90 = vector.shape_cast %89 : vector<1x2x32xf32> to vector<2x32xf32>
    %91 = vector.shape_cast %87 : vector<2x32xf32> to vector<1x2x32xf32>
    tpu.vector_store %arg5[%88, %c0_56, %c0_57], %91 {strides = array<i32>} : memref<8x2x32xf32, #tpu.memory_space<vmem>>, vector<1x2x32xf32>,
    %c8_i32 = arith.constant 8 : i32
    %c0_58 = arith.constant 0 : index
    %c0_59 = arith.constant 0 : index
    %92 = vector.load %arg6[%c0_58, %c0_59] : memref<2x32xf32, #tpu.memory_space<vmem>>, vector<2x32xf32>
    tpu.vector_store %arg6[%c0_58, %c0_59], %87 {strides = array<i32>} : memref<2x32xf32, #tpu.memory_space<vmem>>, vector<2x32xf32>,
    return
  }
  func.func @transform_0(%arg0: i32, %arg1: i32) -> (i32, i32, i32) {
    %c0_i32 = arith.constant 0 : i32
    %c0_i32_0 = arith.constant 0 : i32
    return %arg1, %arg0, %c0_i32 : i32, i32, i32
  }
  func.func @transform_1(%arg0: i32, %arg1: i32) -> (i32, i32) {
    %c0_i32 = arith.constant 0 : i32
    %c0_i32_0 = arith.constant 0 : i32
    return %arg0, %c0_i32 : i32, i32
  }
  func.func @transform_2(%arg0: i32, %arg1: i32) -> (i32, i32) {
    %c0_i32 = arith.constant 0 : i32
    %c0_i32_0 = arith.constant 0 : i32
    %c0_i32_1 = arith.constant 0 : i32
    return %c0_i32, %c0_i32_0 : i32, i32
  }
  func.func @transform_3(%arg0: i32, %arg1: i32) -> (i32, i32, i32) {
    %c0_i32 = arith.constant 0 : i32
    %c0_i32_0 = arith.constant 0 : i32
    return %arg1, %arg0, %c0_i32 : i32, i32, i32
  }
}

module attributes {stable_mosaic.version = 11 : i64} {
  func.func @_matmul_bias_kernel(%arg0: i32, %arg1: i32, %arg2: i32, %arg3: memref<16x32xf32, #tpu.memory_space<vmem>>, %arg4: memref<32x32xf32, #tpu.memory_space<vmem>>, %arg5: memref<1x32xf32, #tpu.memory_space<vmem>>, %arg6: memref<16x32xf32, #tpu.memory_space<vmem>>, %arg7: memref<16x32xf32, #tpu.memory_space<vmem>>) attributes {dimension_semantics = [#tpu.dimension_semantics<parallel>, #tpu.dimension_semantics<parallel>, #tpu.dimension_semantics<arbitrary>], iteration_bounds = array<i64: 1, 1, 1>, scalar_prefetch = 0 : i64, scratch_operands = 1 : i64, tpu.core_type = #tpu.core_type<tc>, window_params = [{transform_indices = @transform_0, window_bounds = array<i64: 16, 32>}, {transform_indices = @transform_1, window_bounds = array<i64: 32, 32>}, {transform_indices = @transform_2, window_bounds = array<i64: 1, 32>}, {transform_indices = @transform_3, window_bounds = array<i64: 16, 32>}]} {
    %c0_i32 = arith.constant 0 : i32
    %0 = arith.cmpi eq, %arg2, %c0_i32 : i32
    %1 = arith.extui %0 : i1 to i32
    %c0_i32_0 = arith.constant 0 : i32
    %2 = arith.cmpi ne, %1, %c0_i32_0 : i32
    scf.if %2 {
      %cst_10 = arith.constant 0.000000e+00 : f32
      %12 = vector.broadcast %cst_10 : f32 to vector<16x32xf32>
      %c0_11 = arith.constant 0 : index
      %c0_12 = arith.constant 0 : index
      %13 = vector.load %arg7[%c0_11, %c0_12] : memref<16x32xf32, #tpu.memory_space<vmem>>, vector<16x32xf32>
      tpu.vector_store %arg7[%c0_11, %c0_12], %12 {strides = array<i32>} : memref<16x32xf32, #tpu.memory_space<vmem>>, vector<16x32xf32>,
    } else {
    }
    %c0 = arith.constant 0 : index
    %c0_1 = arith.constant 0 : index
    %3 = vector.load %arg7[%c0, %c0_1] : memref<16x32xf32, #tpu.memory_space<vmem>>, vector<16x32xf32>
    %c0_2 = arith.constant 0 : index
    %c0_3 = arith.constant 0 : index
    %4 = vector.load %arg3[%c0_2, %c0_3] : memref<16x32xf32, #tpu.memory_space<vmem>>, vector<16x32xf32>
    %c0_4 = arith.constant 0 : index
    %c0_5 = arith.constant 0 : index
    %5 = vector.load %arg4[%c0_4, %c0_5] : memref<32x32xf32, #tpu.memory_space<vmem>>, vector<32x32xf32>
    %cst = arith.constant dense<0.000000e+00> : vector<16x32xf32>
    %6 = tpu.matmul %4, %5, %cst {dimension_numbers = #tpu.dot_dimension_numbers<[1], [0], [0], [1], [0, 0, 1, 1], [], []>} : vector<16x32xf32>, vector<32x32xf32>, vector<16x32xf32> -> vector<16x32xf32>
    %7 = arith.addf %3, %6 : vector<16x32xf32>
    %c0_6 = arith.constant 0 : index
    %c0_7 = arith.constant 0 : index
    %8 = vector.load %arg7[%c0_6, %c0_7] : memref<16x32xf32, #tpu.memory_space<vmem>>, vector<16x32xf32>
    tpu.vector_store %arg7[%c0_6, %c0_7], %7 {strides = array<i32>} : memref<16x32xf32, #tpu.memory_space<vmem>>, vector<16x32xf32>,
    %c0_i32_8 = arith.constant 0 : i32
    %9 = arith.cmpi eq, %arg2, %c0_i32_8 : i32
    %10 = arith.extui %9 : i1 to i32
    %c0_i32_9 = arith.constant 0 : i32
    %11 = arith.cmpi ne, %10, %c0_i32_9 : i32
    scf.if %11 {
      %c0_10 = arith.constant 0 : index
      %c0_11 = arith.constant 0 : index
      %12 = vector.load %arg7[%c0_10, %c0_11] : memref<16x32xf32, #tpu.memory_space<vmem>>, vector<16x32xf32>
      %c0_12 = arith.constant 0 : index
      %c0_13 = arith.constant 0 : index
      %13 = vector.load %arg5[%c0_12, %c0_13] : memref<1x32xf32, #tpu.memory_space<vmem>>, vector<1x32xf32>
      %14 = vector.broadcast %13 : vector<1x32xf32> to vector<16x32xf32>
      %15 = arith.addf %12, %14 : vector<16x32xf32>
      %c0_14 = arith.constant 0 : index
      %c0_15 = arith.constant 0 : index
      %16 = vector.load %arg6[%c0_14, %c0_15] : memref<16x32xf32, #tpu.memory_space<vmem>>, vector<16x32xf32>
      tpu.vector_store %arg6[%c0_14, %c0_15], %15 {strides = array<i32>} : memref<16x32xf32, #tpu.memory_space<vmem>>, vector<16x32xf32>,
    } else {
    }
    return
  }
  func.func @transform_0(%arg0: i32, %arg1: i32, %arg2: i32) -> (i32, i32) {
    %c0_i32 = arith.constant 0 : i32
    return %arg0, %arg2 : i32, i32
  }
  func.func @transform_1(%arg0: i32, %arg1: i32, %arg2: i32) -> (i32, i32) {
    %c0_i32 = arith.constant 0 : i32
    return %arg2, %arg1 : i32, i32
  }
  func.func @transform_2(%arg0: i32, %arg1: i32, %arg2: i32) -> (i32, i32) {
    %c0_i32 = arith.constant 0 : i32
    %c0_i32_0 = arith.constant 0 : i32
    return %c0_i32, %arg1 : i32, i32
  }
  func.func @transform_3(%arg0: i32, %arg1: i32, %arg2: i32) -> (i32, i32) {
    %c0_i32 = arith.constant 0 : i32
    return %arg0, %arg1 : i32, i32
  }
}

module attributes {stable_mosaic.version = 11 : i64} {
  func.func @_matmul_bias_kernel(%arg0: i32, %arg1: i32, %arg2: i32, %arg3: memref<16x32xf32, #tpu.memory_space<vmem>>, %arg4: memref<32x64xf32, #tpu.memory_space<vmem>>, %arg5: memref<1x64xf32, #tpu.memory_space<vmem>>, %arg6: memref<16x64xf32, #tpu.memory_space<vmem>>, %arg7: memref<16x64xf32, #tpu.memory_space<vmem>>) attributes {dimension_semantics = [#tpu.dimension_semantics<parallel>, #tpu.dimension_semantics<parallel>, #tpu.dimension_semantics<arbitrary>], iteration_bounds = array<i64: 1, 1, 1>, scalar_prefetch = 0 : i64, scratch_operands = 1 : i64, tpu.core_type = #tpu.core_type<tc>, window_params = [{transform_indices = @transform_0, window_bounds = array<i64: 16, 32>}, {transform_indices = @transform_1, window_bounds = array<i64: 32, 64>}, {transform_indices = @transform_2, window_bounds = array<i64: 1, 64>}, {transform_indices = @transform_3, window_bounds = array<i64: 16, 64>}]} {
    %c0_i32 = arith.constant 0 : i32
    %0 = arith.cmpi eq, %arg2, %c0_i32 : i32
    %1 = arith.extui %0 : i1 to i32
    %c0_i32_0 = arith.constant 0 : i32
    %2 = arith.cmpi ne, %1, %c0_i32_0 : i32
    scf.if %2 {
      %cst_10 = arith.constant 0.000000e+00 : f32
      %12 = vector.broadcast %cst_10 : f32 to vector<16x64xf32>
      %c0_11 = arith.constant 0 : index
      %c0_12 = arith.constant 0 : index
      %13 = vector.load %arg7[%c0_11, %c0_12] : memref<16x64xf32, #tpu.memory_space<vmem>>, vector<16x64xf32>
      tpu.vector_store %arg7[%c0_11, %c0_12], %12 {strides = array<i32>} : memref<16x64xf32, #tpu.memory_space<vmem>>, vector<16x64xf32>,
    } else {
    }
    %c0 = arith.constant 0 : index
    %c0_1 = arith.constant 0 : index
    %3 = vector.load %arg7[%c0, %c0_1] : memref<16x64xf32, #tpu.memory_space<vmem>>, vector<16x64xf32>
    %c0_2 = arith.constant 0 : index
    %c0_3 = arith.constant 0 : index
    %4 = vector.load %arg3[%c0_2, %c0_3] : memref<16x32xf32, #tpu.memory_space<vmem>>, vector<16x32xf32>
    %c0_4 = arith.constant 0 : index
    %c0_5 = arith.constant 0 : index
    %5 = vector.load %arg4[%c0_4, %c0_5] : memref<32x64xf32, #tpu.memory_space<vmem>>, vector<32x64xf32>
    %cst = arith.constant dense<0.000000e+00> : vector<16x64xf32>
    %6 = tpu.matmul %4, %5, %cst {dimension_numbers = #tpu.dot_dimension_numbers<[1], [0], [0], [1], [0, 0, 1, 1], [], []>} : vector<16x32xf32>, vector<32x64xf32>, vector<16x64xf32> -> vector<16x64xf32>
    %7 = arith.addf %3, %6 : vector<16x64xf32>
    %c0_6 = arith.constant 0 : index
    %c0_7 = arith.constant 0 : index
    %8 = vector.load %arg7[%c0_6, %c0_7] : memref<16x64xf32, #tpu.memory_space<vmem>>, vector<16x64xf32>
    tpu.vector_store %arg7[%c0_6, %c0_7], %7 {strides = array<i32>} : memref<16x64xf32, #tpu.memory_space<vmem>>, vector<16x64xf32>,
    %c0_i32_8 = arith.constant 0 : i32
    %9 = arith.cmpi eq, %arg2, %c0_i32_8 : i32
    %10 = arith.extui %9 : i1 to i32
    %c0_i32_9 = arith.constant 0 : i32
    %11 = arith.cmpi ne, %10, %c0_i32_9 : i32
    scf.if %11 {
      %c0_10 = arith.constant 0 : index
      %c0_11 = arith.constant 0 : index
      %12 = vector.load %arg7[%c0_10, %c0_11] : memref<16x64xf32, #tpu.memory_space<vmem>>, vector<16x64xf32>
      %c0_12 = arith.constant 0 : index
      %c0_13 = arith.constant 0 : index
      %13 = vector.load %arg5[%c0_12, %c0_13] : memref<1x64xf32, #tpu.memory_space<vmem>>, vector<1x64xf32>
      %14 = vector.broadcast %13 : vector<1x64xf32> to vector<16x64xf32>
      %15 = arith.addf %12, %14 : vector<16x64xf32>
      %c0_14 = arith.constant 0 : index
      %c0_15 = arith.constant 0 : index
      %16 = vector.load %arg6[%c0_14, %c0_15] : memref<16x64xf32, #tpu.memory_space<vmem>>, vector<16x64xf32>
      tpu.vector_store %arg6[%c0_14, %c0_15], %15 {strides = array<i32>} : memref<16x64xf32, #tpu.memory_space<vmem>>, vector<16x64xf32>,
    } else {
    }
    return
  }
  func.func @transform_0(%arg0: i32, %arg1: i32, %arg2: i32) -> (i32, i32) {
    %c0_i32 = arith.constant 0 : i32
    return %arg0, %arg2 : i32, i32
  }
  func.func @transform_1(%arg0: i32, %arg1: i32, %arg2: i32) -> (i32, i32) {
    %c0_i32 = arith.constant 0 : i32
    return %arg2, %arg1 : i32, i32
  }
  func.func @transform_2(%arg0: i32, %arg1: i32, %arg2: i32) -> (i32, i32) {
    %c0_i32 = arith.constant 0 : i32
    %c0_i32_0 = arith.constant 0 : i32
    return %c0_i32, %arg1 : i32, i32
  }
  func.func @transform_3(%arg0: i32, %arg1: i32, %arg2: i32) -> (i32, i32) {
    %c0_i32 = arith.constant 0 : i32
    return %arg0, %arg1 : i32, i32
  }
}

module attributes {stable_mosaic.version = 11 : i64} {
  func.func @kernel(%arg0: i32, %arg1: i32, %arg2: memref<8x2x32xf32, #tpu.memory_space<vmem>>, %arg3: memref<2x32xf32, #tpu.memory_space<vmem>>, %arg4: memref<32x32xf32, #tpu.memory_space<vmem>>, %arg5: memref<2x8x32xf32, #tpu.memory_space<vmem>>, %arg6: memref<2x32xf32, #tpu.memory_space<vmem>>) attributes {dimension_semantics = [#tpu.dimension_semantics<parallel>, #tpu.dimension_semantics<arbitrary>], iteration_bounds = array<i64: 1, 1>, scalar_prefetch = 0 : i64, scratch_operands = 1 : i64, tpu.core_type = #tpu.core_type<tc>, window_params = [{transform_indices = @transform_0, window_bounds = array<i64: 8, 2, 32>}, {transform_indices = @transform_1, window_bounds = array<i64: 2, 32>}, {pipeline_mode = #tpu.pipeline_mode<synchronous>, transform_indices = @transform_2, window_bounds = array<i64: 32, 32>}, {transform_indices = @transform_3, window_bounds = array<i64: 2, 8, 32>}]} {
    %c0_i32 = arith.constant 0 : i32
    %0 = arith.cmpi eq, %arg1, %c0_i32 : i32
    %1 = arith.extui %0 : i1 to i32
    %c0_i32_0 = arith.constant 0 : i32
    %2 = arith.cmpi ne, %1, %c0_i32_0 : i32
    scf.if %2 {
      %c0_60 = arith.constant 0 : index
      %c0_61 = arith.constant 0 : index
      %93 = vector.load %arg3[%c0_60, %c0_61] : memref<2x32xf32, #tpu.memory_space<vmem>>, vector<2x32xf32>
      %c0_62 = arith.constant 0 : index
      %c0_63 = arith.constant 0 : index
      %94 = vector.load %arg6[%c0_62, %c0_63] : memref<2x32xf32, #tpu.memory_space<vmem>>, vector<2x32xf32>
      tpu.vector_store %arg6[%c0_62, %c0_63], %93 {strides = array<i32>} : memref<2x32xf32, #tpu.memory_space<vmem>>, vector<2x32xf32>,
    } else {
    }
    %c0 = arith.constant 0 : index
    %c0_1 = arith.constant 0 : index
    %3 = vector.load %arg6[%c0, %c0_1] : memref<2x32xf32, #tpu.memory_space<vmem>>, vector<2x32xf32>
    %c0_i32_2 = arith.constant 0 : i32
    %4 = arith.index_cast %c0_i32_2 : i32 to index
    %c0_3 = arith.constant 0 : index
    %c0_4 = arith.constant 0 : index
    %5 = vector.load %arg2[%4, %c0_3, %c0_4] : memref<8x2x32xf32, #tpu.memory_space<vmem>>, vector<1x2x32xf32>
    %6 = vector.shape_cast %5 : vector<1x2x32xf32> to vector<2x32xf32>
    %c0_5 = arith.constant 0 : index
    %c0_6 = arith.constant 0 : index
    %7 = vector.load %arg4[%c0_5, %c0_6] : memref<32x32xf32, #tpu.memory_space<vmem>>, vector<32x32xf32>
    %cst = arith.constant dense<0.000000e+00> : vector<2x32xf32>
    %8 = tpu.matmul %3, %7, %cst {dimension_numbers = #tpu.dot_dimension_numbers<[1], [0], [0], [1], [0, 0, 1, 1], [], []>} : vector<2x32xf32>, vector<32x32xf32>, vector<2x32xf32> -> vector<2x32xf32>
    %9 = arith.addf %6, %8 : vector<2x32xf32>
    %10 = math.tanh %9 : vector<2x32xf32>
    %c0_7 = arith.constant 0 : index
    %11 = arith.index_cast %c0_i32_2 : i32 to index
    %c0_8 = arith.constant 0 : index
    %12 = vector.load %arg5[%c0_7, %11, %c0_8] : memref<2x8x32xf32, #tpu.memory_space<vmem>>, vector<2x1x32xf32>
    %13 = vector.shape_cast %12 : vector<2x1x32xf32> to vector<2x32xf32>
    %14 = vector.shape_cast %10 : vector<2x32xf32> to vector<2x1x32xf32>
    tpu.vector_store %arg5[%c0_7, %11, %c0_8], %14 {strides = array<i32>} : memref<2x8x32xf32, #tpu.memory_space<vmem>>, vector<2x1x32xf32>,
    %c1_i32 = arith.constant 1 : i32
    %15 = arith.index_cast %c1_i32 : i32 to index
    %c0_9 = arith.constant 0 : index
    %c0_10 = arith.constant 0 : index
    %16 = vector.load %arg2[%15, %c0_9, %c0_10] : memref<8x2x32xf32, #tpu.memory_space<vmem>>, vector<1x2x32xf32>
    %17 = vector.shape_cast %16 : vector<1x2x32xf32> to vector<2x32xf32>
    %c0_11 = arith.constant 0 : index
    %c0_12 = arith.constant 0 : index
    %18 = vector.load %arg4[%c0_11, %c0_12] : memref<32x32xf32, #tpu.memory_space<vmem>>, vector<32x32xf32>
    %cst_13 = arith.constant dense<0.000000e+00> : vector<2x32xf32>
    %19 = tpu.matmul %10, %18, %cst_13 {dimension_numbers = #tpu.dot_dimension_numbers<[1], [0], [0], [1], [0, 0, 1, 1], [], []>} : vector<2x32xf32>, vector<32x32xf32>, vector<2x32xf32> -> vector<2x32xf32>
    %20 = arith.addf %17, %19 : vector<2x32xf32>
    %21 = math.tanh %20 : vector<2x32xf32>
    %c0_14 = arith.constant 0 : index
    %22 = arith.index_cast %c1_i32 : i32 to index
    %c0_15 = arith.constant 0 : index
    %23 = vector.load %arg5[%c0_14, %22, %c0_15] : memref<2x8x32xf32, #tpu.memory_space<vmem>>, vector<2x1x32xf32>
    %24 = vector.shape_cast %23 : vector<2x1x32xf32> to vector<2x32xf32>
    %25 = vector.shape_cast %21 : vector<2x32xf32> to vector<2x1x32xf32>
    tpu.vector_store %arg5[%c0_14, %22, %c0_15], %25 {strides = array<i32>} : memref<2x8x32xf32, #tpu.memory_space<vmem>>, vector<2x1x32xf32>,
    %c2_i32 = arith.constant 2 : i32
    %26 = arith.index_cast %c2_i32 : i32 to index
    %c0_16 = arith.constant 0 : index
    %c0_17 = arith.constant 0 : index
    %27 = vector.load %arg2[%26, %c0_16, %c0_17] : memref<8x2x32xf32, #tpu.memory_space<vmem>>, vector<1x2x32xf32>
    %28 = vector.shape_cast %27 : vector<1x2x32xf32> to vector<2x32xf32>
    %c0_18 = arith.constant 0 : index
    %c0_19 = arith.constant 0 : index
    %29 = vector.load %arg4[%c0_18, %c0_19] : memref<32x32xf32, #tpu.memory_space<vmem>>, vector<32x32xf32>
    %cst_20 = arith.constant dense<0.000000e+00> : vector<2x32xf32>
    %30 = tpu.matmul %21, %29, %cst_20 {dimension_numbers = #tpu.dot_dimension_numbers<[1], [0], [0], [1], [0, 0, 1, 1], [], []>} : vector<2x32xf32>, vector<32x32xf32>, vector<2x32xf32> -> vector<2x32xf32>
    %31 = arith.addf %28, %30 : vector<2x32xf32>
    %32 = math.tanh %31 : vector<2x32xf32>
    %c0_21 = arith.constant 0 : index
    %33 = arith.index_cast %c2_i32 : i32 to index
    %c0_22 = arith.constant 0 : index
    %34 = vector.load %arg5[%c0_21, %33, %c0_22] : memref<2x8x32xf32, #tpu.memory_space<vmem>>, vector<2x1x32xf32>
    %35 = vector.shape_cast %34 : vector<2x1x32xf32> to vector<2x32xf32>
    %36 = vector.shape_cast %32 : vector<2x32xf32> to vector<2x1x32xf32>
    tpu.vector_store %arg5[%c0_21, %33, %c0_22], %36 {strides = array<i32>} : memref<2x8x32xf32, #tpu.memory_space<vmem>>, vector<2x1x32xf32>,
    %c3_i32 = arith.constant 3 : i32
    %37 = arith.index_cast %c3_i32 : i32 to index
    %c0_23 = arith.constant 0 : index
    %c0_24 = arith.constant 0 : index
    %38 = vector.load %arg2[%37, %c0_23, %c0_24] : memref<8x2x32xf32, #tpu.memory_space<vmem>>, vector<1x2x32xf32>
    %39 = vector.shape_cast %38 : vector<1x2x32xf32> to vector<2x32xf32>
    %c0_25 = arith.constant 0 : index
    %c0_26 = arith.constant 0 : index
    %40 = vector.load %arg4[%c0_25, %c0_26] : memref<32x32xf32, #tpu.memory_space<vmem>>, vector<32x32xf32>
    %cst_27 = arith.constant dense<0.000000e+00> : vector<2x32xf32>
    %41 = tpu.matmul %32, %40, %cst_27 {dimension_numbers = #tpu.dot_dimension_numbers<[1], [0], [0], [1], [0, 0, 1, 1], [], []>} : vector<2x32xf32>, vector<32x32xf32>, vector<2x32xf32> -> vector<2x32xf32>
    %42 = arith.addf %39, %41 : vector<2x32xf32>
    %43 = math.tanh %42 : vector<2x32xf32>
    %c0_28 = arith.constant 0 : index
    %44 = arith.index_cast %c3_i32 : i32 to index
    %c0_29 = arith.constant 0 : index
    %45 = vector.load %arg5[%c0_28, %44, %c0_29] : memref<2x8x32xf32, #tpu.memory_space<vmem>>, vector<2x1x32xf32>
    %46 = vector.shape_cast %45 : vector<2x1x32xf32> to vector<2x32xf32>
    %47 = vector.shape_cast %43 : vector<2x32xf32> to vector<2x1x32xf32>
    tpu.vector_store %arg5[%c0_28, %44, %c0_29], %47 {strides = array<i32>} : memref<2x8x32xf32, #tpu.memory_space<vmem>>, vector<2x1x32xf32>,
    %c4_i32 = arith.constant 4 : i32
    %48 = arith.index_cast %c4_i32 : i32 to index
    %c0_30 = arith.constant 0 : index
    %c0_31 = arith.constant 0 : index
    %49 = vector.load %arg2[%48, %c0_30, %c0_31] : memref<8x2x32xf32, #tpu.memory_space<vmem>>, vector<1x2x32xf32>
    %50 = vector.shape_cast %49 : vector<1x2x32xf32> to vector<2x32xf32>
    %c0_32 = arith.constant 0 : index
    %c0_33 = arith.constant 0 : index
    %51 = vector.load %arg4[%c0_32, %c0_33] : memref<32x32xf32, #tpu.memory_space<vmem>>, vector<32x32xf32>
    %cst_34 = arith.constant dense<0.000000e+00> : vector<2x32xf32>
    %52 = tpu.matmul %43, %51, %cst_34 {dimension_numbers = #tpu.dot_dimension_numbers<[1], [0], [0], [1], [0, 0, 1, 1], [], []>} : vector<2x32xf32>, vector<32x32xf32>, vector<2x32xf32> -> vector<2x32xf32>
    %53 = arith.addf %50, %52 : vector<2x32xf32>
    %54 = math.tanh %53 : vector<2x32xf32>
    %c0_35 = arith.constant 0 : index
    %55 = arith.index_cast %c4_i32 : i32 to index
    %c0_36 = arith.constant 0 : index
    %56 = vector.load %arg5[%c0_35, %55, %c0_36] : memref<2x8x32xf32, #tpu.memory_space<vmem>>, vector<2x1x32xf32>
    %57 = vector.shape_cast %56 : vector<2x1x32xf32> to vector<2x32xf32>
    %58 = vector.shape_cast %54 : vector<2x32xf32> to vector<2x1x32xf32>
    tpu.vector_store %arg5[%c0_35, %55, %c0_36], %58 {strides = array<i32>} : memref<2x8x32xf32, #tpu.memory_space<vmem>>, vector<2x1x32xf32>,
    %c5_i32 = arith.constant 5 : i32
    %59 = arith.index_cast %c5_i32 : i32 to index
    %c0_37 = arith.constant 0 : index
    %c0_38 = arith.constant 0 : index
    %60 = vector.load %arg2[%59, %c0_37, %c0_38] : memref<8x2x32xf32, #tpu.memory_space<vmem>>, vector<1x2x32xf32>
    %61 = vector.shape_cast %60 : vector<1x2x32xf32> to vector<2x32xf32>
    %c0_39 = arith.constant 0 : index
    %c0_40 = arith.constant 0 : index
    %62 = vector.load %arg4[%c0_39, %c0_40] : memref<32x32xf32, #tpu.memory_space<vmem>>, vector<32x32xf32>
    %cst_41 = arith.constant dense<0.000000e+00> : vector<2x32xf32>
    %63 = tpu.matmul %54, %62, %cst_41 {dimension_numbers = #tpu.dot_dimension_numbers<[1], [0], [0], [1], [0, 0, 1, 1], [], []>} : vector<2x32xf32>, vector<32x32xf32>, vector<2x32xf32> -> vector<2x32xf32>
    %64 = arith.addf %61, %63 : vector<2x32xf32>
    %65 = math.tanh %64 : vector<2x32xf32>
    %c0_42 = arith.constant 0 : index
    %66 = arith.index_cast %c5_i32 : i32 to index
    %c0_43 = arith.constant 0 : index
    %67 = vector.load %arg5[%c0_42, %66, %c0_43] : memref<2x8x32xf32, #tpu.memory_space<vmem>>, vector<2x1x32xf32>
    %68 = vector.shape_cast %67 : vector<2x1x32xf32> to vector<2x32xf32>
    %69 = vector.shape_cast %65 : vector<2x32xf32> to vector<2x1x32xf32>
    tpu.vector_store %arg5[%c0_42, %66, %c0_43], %69 {strides = array<i32>} : memref<2x8x32xf32, #tpu.memory_space<vmem>>, vector<2x1x32xf32>,
    %c6_i32 = arith.constant 6 : i32
    %70 = arith.index_cast %c6_i32 : i32 to index
    %c0_44 = arith.constant 0 : index
    %c0_45 = arith.constant 0 : index
    %71 = vector.load %arg2[%70, %c0_44, %c0_45] : memref<8x2x32xf32, #tpu.memory_space<vmem>>, vector<1x2x32xf32>
    %72 = vector.shape_cast %71 : vector<1x2x32xf32> to vector<2x32xf32>
    %c0_46 = arith.constant 0 : index
    %c0_47 = arith.constant 0 : index
    %73 = vector.load %arg4[%c0_46, %c0_47] : memref<32x32xf32, #tpu.memory_space<vmem>>, vector<32x32xf32>
    %cst_48 = arith.constant dense<0.000000e+00> : vector<2x32xf32>
    %74 = tpu.matmul %65, %73, %cst_48 {dimension_numbers = #tpu.dot_dimension_numbers<[1], [0], [0], [1], [0, 0, 1, 1], [], []>} : vector<2x32xf32>, vector<32x32xf32>, vector<2x32xf32> -> vector<2x32xf32>
    %75 = arith.addf %72, %74 : vector<2x32xf32>
    %76 = math.tanh %75 : vector<2x32xf32>
    %c0_49 = arith.constant 0 : index
    %77 = arith.index_cast %c6_i32 : i32 to index
    %c0_50 = arith.constant 0 : index
    %78 = vector.load %arg5[%c0_49, %77, %c0_50] : memref<2x8x32xf32, #tpu.memory_space<vmem>>, vector<2x1x32xf32>
    %79 = vector.shape_cast %78 : vector<2x1x32xf32> to vector<2x32xf32>
    %80 = vector.shape_cast %76 : vector<2x32xf32> to vector<2x1x32xf32>
    tpu.vector_store %arg5[%c0_49, %77, %c0_50], %80 {strides = array<i32>} : memref<2x8x32xf32, #tpu.memory_space<vmem>>, vector<2x1x32xf32>,
    %c7_i32 = arith.constant 7 : i32
    %81 = arith.index_cast %c7_i32 : i32 to index
    %c0_51 = arith.constant 0 : index
    %c0_52 = arith.constant 0 : index
    %82 = vector.load %arg2[%81, %c0_51, %c0_52] : memref<8x2x32xf32, #tpu.memory_space<vmem>>, vector<1x2x32xf32>
    %83 = vector.shape_cast %82 : vector<1x2x32xf32> to vector<2x32xf32>
    %c0_53 = arith.constant 0 : index
    %c0_54 = arith.constant 0 : index
    %84 = vector.load %arg4[%c0_53, %c0_54] : memref<32x32xf32, #tpu.memory_space<vmem>>, vector<32x32xf32>
    %cst_55 = arith.constant dense<0.000000e+00> : vector<2x32xf32>
    %85 = tpu.matmul %76, %84, %cst_55 {dimension_numbers = #tpu.dot_dimension_numbers<[1], [0], [0], [1], [0, 0, 1, 1], [], []>} : vector<2x32xf32>, vector<32x32xf32>, vector<2x32xf32> -> vector<2x32xf32>
    %86 = arith.addf %83, %85 : vector<2x32xf32>
    %87 = math.tanh %86 : vector<2x32xf32>
    %c0_56 = arith.constant 0 : index
    %88 = arith.index_cast %c7_i32 : i32 to index
    %c0_57 = arith.constant 0 : index
    %89 = vector.load %arg5[%c0_56, %88, %c0_57] : memref<2x8x32xf32, #tpu.memory_space<vmem>>, vector<2x1x32xf32>
    %90 = vector.shape_cast %89 : vector<2x1x32xf32> to vector<2x32xf32>
    %91 = vector.shape_cast %87 : vector<2x32xf32> to vector<2x1x32xf32>
    tpu.vector_store %arg5[%c0_56, %88, %c0_57], %91 {strides = array<i32>} : memref<2x8x32xf32, #tpu.memory_space<vmem>>, vector<2x1x32xf32>,
    %c8_i32 = arith.constant 8 : i32
    %c0_58 = arith.constant 0 : index
    %c0_59 = arith.constant 0 : index
    %92 = vector.load %arg6[%c0_58, %c0_59] : memref<2x32xf32, #tpu.memory_space<vmem>>, vector<2x32xf32>
    tpu.vector_store %arg6[%c0_58, %c0_59], %87 {strides = array<i32>} : memref<2x32xf32, #tpu.memory_space<vmem>>, vector<2x32xf32>,
    return
  }
  func.func @transform_0(%arg0: i32, %arg1: i32) -> (i32, i32, i32) {
    %c0_i32 = arith.constant 0 : i32
    %c0_i32_0 = arith.constant 0 : i32
    return %arg1, %arg0, %c0_i32 : i32, i32, i32
  }
  func.func @transform_1(%arg0: i32, %arg1: i32) -> (i32, i32) {
    %c0_i32 = arith.constant 0 : i32
    %c0_i32_0 = arith.constant 0 : i32
    return %arg0, %c0_i32 : i32, i32
  }
  func.func @transform_2(%arg0: i32, %arg1: i32) -> (i32, i32) {
    %c0_i32 = arith.constant 0 : i32
    %c0_i32_0 = arith.constant 0 : i32
    %c0_i32_1 = arith.constant 0 : i32
    return %c0_i32, %c0_i32_0 : i32, i32
  }
  func.func @transform_3(%arg0: i32, %arg1: i32) -> (i32, i32, i32) {
    %c0_i32 = arith.constant 0 : i32
    %c0_i32_0 = arith.constant 0 : i32
    return %arg0, %arg1, %c0_i32 : i32, i32, i32
  }
}

</mosaic_0001>

<llo_original>
// kernel: rnn_lm_forward.9
$region0: #{rnn_lm_forward.9}
  #allocation0 [shape = 'u32[]', space=smem, size = 0x4, offset = 0x4, fixed_abs, tag = 'smem constant byte address 0x4 - core index']
  #allocation1 [shape = 'u32[144,128]{1,0:T(1,128)}', space=vmem, size = 0x12000, scoped, tag = 'internal scratch']
  #allocation2 [shape = 'f32[16,64]{1,0:T(8,128)}', space=vmem, size = 0x2000, scoped, tag = 'scratch operand']
  %s0 = inlined_call_operand.vmem [shape: f32[16,32], index: 0, kind: input, shape index: {}]
  %s1 = inlined_call_operand.vmem [shape: f32[32,64], index: 1, kind: input, shape index: {}]
  %s2 = inlined_call_operand.vmem [shape: f32[1,64], index: 2, kind: input, shape index: {}]
  %s3 = inlined_call_operand.hbm [shape: f32[16,64], index: 3, kind: output, shape index: {}]
  %s4 = sld [smem:[#allocation0]]
  $region30: #{rnn_lm_forward.9} parent=0
    _
  %s6 = ssub.s32 1, %s4
  %s7 = scalar_select 0, %s6, %s4
  $region1: #{rnn_lm_forward.9} parent=0
    #allocation3 [shape = 'u8[8192]{0}', space=vmem, size = 0x2000, scoped, tag = 'output window, operand 0, single buffered']
    #allocation4 [shape = 's32[1]{0}', space=sflag, size = 0x4, scoped, tag = 'scoped memory for rnn_lm_forward.9']
    %8 = vsyncpa [#allocation4], 0
    // Predicated region
    $region2: #{rnn_lm_forward.9} parent=1 // pred_check
      _
    $region3: #{rnn_lm_forward.9} parent=1 // pred_check_branch
      %10 = sbr.rel (0) target = $region5
    $region4: #{rnn_lm_forward.9} parent=1 // pred_region
      _
    $region5: #{rnn_lm_forward.9} parent=1 // pred_fallthru
      _
    // Predicated region
    $region6: #{rnn_lm_forward.9} parent=1 // pred_check
      _
    $region7: #{rnn_lm_forward.9} parent=1 // pred_check_branch
      %12 = sbr.rel (0) target = $region9
    $region8: #{rnn_lm_forward.9} parent=1 // pred_region
      _
    $region9: #{rnn_lm_forward.9} parent=1 // pred_fallthru
      _
    // Predicated region
    $region10: #{rnn_lm_forward.9} parent=1 // pred_check
      _
    $region11: #{rnn_lm_forward.9} parent=1 // pred_check_branch
      %14 = sbr.rel (0) target = $region13
    $region12: #{rnn_lm_forward.9} parent=1 // pred_region
      _
    $region13: #{rnn_lm_forward.9} parent=1 // pred_fallthru
      _
    %p15 = scmp.eq.s32.totalorder 0, 0
    // Predicated region
    $region14: #{rnn_lm_forward.9} parent=1 // pred_check
      %p16 = pneg %p15
    $region15: #{rnn_lm_forward.9} parent=1 // pred_check_branch
      %18 = sbr.rel (%p16) target = $region17
    $region16: #{rnn_lm_forward.9} parent=1 // pred_region
      %vm19 = vcmask 523264
      %20 = vst.msk [vmem:[#allocation2] sm:$0xff] %vm19, 0.0
      %21 = vst.msk [vmem:[#allocation2 + $0x8] sm:$0xff] %vm19, 0.0
    $region17: #{rnn_lm_forward.9} parent=1 // pred_fallthru
      _
    %v22 = vld [vmem:[#allocation2] sm:$0xff]
    %v23 = vld [vmem:[#allocation2 + $0x8] sm:$0xff]
    %v24 = vld [vmem:[%s0] sm:$0xff]
    %v25 = vld [vmem:[%s0 + $0x8] sm:$0xff]
    %v26 = vld [vmem:[%s1] sm:$0xff]
    %v27 = vld [vmem:[%s1 + $0x8] sm:$0xff]
    %v28 = vld [vmem:[%s1 + $0x10] sm:$0xff]
    %v29 = vld [vmem:[%s1 + $0x18] sm:$0xff]
    %vm30 = vcmask 261120
    %v32 = vsel %vm30, %v24, 0
    %v35 = vsel %vm30, %v25, 0
    %37 = vmatprep.subr.mxu0 0.0
    %38 = vmatpush1.msra.mxu0 0.0
    %39 = vmatprep.subr.mxu0 0.0
    %40 = vmatpush1.msra.mxu0 0.0
    %41 = vmatprep.subr.mxu0 0.0
    %42 = vmatpush1.msra.mxu0 0.0
    %43 = vmatprep.subr.mxu0 0.0
    %44 = vmatpush1.msra.mxu0 0.0
    %45 = vmatprep.subr.mxu0 0.0
    %46 = vmatpush1.msra.mxu0 0.0
    %47 = vmatprep.subr.mxu0 0.0
    %48 = vmatpush1.msra.mxu0 0.0
    %49 = vmatprep.subr.mxu0 0.0
    %50 = vmatpush1.msra.mxu0 0.0
    %51 = vmatprep.subr.mxu0 0.0
    %52 = vmatpush1.msra.mxu0 0.0
    %53 = vmatprep.subr.mxu0 0.0
    %54 = vmatpush1.msra.mxu0 0.0
    %55 = vmatprep.subr.mxu0 0.0
    %56 = vmatpush1.msra.mxu0 0.0
    %57 = vmatprep.subr.mxu0 0.0
    %58 = vmatpush1.msra.mxu0 0.0
    %59 = vmatprep.subr.mxu0 0.0
    %60 = vmatpush1.msra.mxu0 0.0
    %61 = vmatprep.subr.mxu0 0.0
    %62 = vmatpush1.msra.mxu0 %v29
    %63 = vmatprep.subr.mxu0 0.0
    %64 = vmatpush1.msra.mxu0 %v28
    %65 = vmatprep.subr.mxu0 0.0
    %66 = vmatpush1.msra.mxu0 %v27
    %67 = vmatprep.subr.mxu0 0.0
    %68 = vmatpush1.msra.mxu0 %v26
    %69 = vmatprep.subr.mxu0 0.0
    %70 = vmatpush2.msra.mxu0 0.0
    %71 = vmatprep.subr.mxu0 0.0
    %72 = vmatpush2.msra.mxu0 0.0
    %73 = vmatprep.subr.mxu0 0.0
    %74 = vmatpush2.msra.mxu0 0.0
    %75 = vmatprep.subr.mxu0 0.0
    %76 = vmatpush2.msra.mxu0 0.0
    %77 = vmatprep.subr.mxu0 0.0
    %78 = vmatpush2.msra.mxu0 0.0
    %79 = vmatprep.subr.mxu0 0.0
    %80 = vmatpush2.msra.mxu0 0.0
    %81 = vmatprep.subr.mxu0 0.0
    %82 = vmatpush2.msra.mxu0 0.0
    %83 = vmatprep.subr.mxu0 0.0
    %84 = vmatpush2.msra.mxu0 0.0
    %85 = vmatprep.subr.mxu0 0.0
    %86 = vmatpush2.msra.mxu0 0.0
    %87 = vmatprep.subr.mxu0 0.0
    %88 = vmatpush2.msra.mxu0 0.0
    %89 = vmatprep.subr.mxu0 0.0
    %90 = vmatpush2.msra.mxu0 0.0
    %91 = vmatprep.subr.mxu0 0.0
    %92 = vmatpush2.msra.mxu0 0.0
    %93 = vmatprep.subr.mxu0 0.0
    %94 = vmatpush2.msra.mxu0 0.0
    %95 = vmatprep.subr.mxu0 0.0
    %96 = vmatpush2.msra.mxu0 0.0
    %97 = vmatprep.subr.mxu0 0.0
    %98 = vmatpush2.msra.mxu0 0.0
    %99 = vmatprep.subr.mxu0 0.0
    %100 = vmatpush2.msra.mxu0 0.0
    %101 = vmatprep.mubr.f32.mxu0 0.0
    %102 = vmatmul.mubr.f32.gmra.mxu0 %v32
    %v103 = vpop.f32.mrf.mxu0
    %v104 = vadd.f32 0.0, %v103
    %v105 = vpop.f32.mrf.mxu0
    %106 = vmatprep.mubr.f32.mxu0 0.0
    %107 = vmatmul.mubr.f32.gmra.mxu0 %v35
    %v108 = vpop.f32.mrf.mxu0
    %v109 = vadd.f32 0.0, %v108
    %v110 = vpop.f32.mrf.mxu0
    %111 = vdwg.mxu0
    %v112 = vadd.f32 %v22, %v104
    %v113 = vadd.f32 %v23, %v109
    %vm114 = vcmask 523264
    %115 = vst.msk [vmem:[#allocation2] sm:$0xff] %vm114, %v112
    %116 = vst.msk [vmem:[#allocation2 + $0x8] sm:$0xff] %vm114, %v113
    // Predicated region
    $region18: #{rnn_lm_forward.9} parent=1 // pred_check
      %p117 = pneg %p15
    $region19: #{rnn_lm_forward.9} parent=1 // pred_check_branch
      %119 = sbr.rel (%p117) target = $region21
    $region20: #{rnn_lm_forward.9} parent=1 // pred_region
      %v120 = vld [vmem:[#allocation2] sm:$0xff]
      %v121 = vld [vmem:[#allocation2 + $0x8] sm:$0xff]
      %v122 = vld [vmem:[%s2] sm:$0x1]
      %v124 = vlaneseq
      %v125 = vshrl.u32 %v124, 7
      %v126 = vsub.s32 0, %v125
      %v127 = vrot.slane %v122, %v126
      %v129 = vadd.f32 %v120, %v127
      %v130 = vadd.f32 %v121, %v127
      %131 = vst.msk [vmem:[#allocation3] sm:$0xff] %vm114, %v129
      %132 = vst.msk [vmem:[#allocation3 + $0x8] sm:$0xff] %vm114, %v130
    $region21: #{rnn_lm_forward.9} parent=1 // pred_fallthru
      _
    // Predicated region
    $region22: #{rnn_lm_forward.9} parent=1 // pred_check
      _
    $region23: #{rnn_lm_forward.9} parent=1 // pred_check_branch
      %134 = sbr.rel (0) target = $region25
    $region24: #{rnn_lm_forward.9} parent=1 // pred_region
      %s136 = ssub.s32 256, 256
      %137 = vsyncadd [#allocation4], %s136
      %s138 = sshll.u32 [#allocation3], 4
      %s139 = int_to_ptr.vmem [resolvable:$true] %s138
      %144 = dma.vmem_to_hbm [thread:$0]  %s139, 256, %s3, [#allocation4], 128, 128, 8
    $region25: #{rnn_lm_forward.9} parent=1 // pred_fallthru
      _
    // Predicated region
    $region26: #{rnn_lm_forward.9} parent=1 // pred_check
      _
    $region27: #{rnn_lm_forward.9} parent=1 // pred_check_branch
      %146 = sbr.rel (0) target = $region29
    $region28: #{rnn_lm_forward.9} parent=1 // pred_region
      %147 = dma.done [#allocation4], 256
    $region29: #{rnn_lm_forward.9} parent=1 // pred_fallthru
      _
    %148 = vsyncpa [#allocation4], 1

// kernel: rnn_lm_forward.5
$region0: #{rnn_lm_forward.5}
  #allocation0 [shape = 'u32[]', space=smem, size = 0x4, offset = 0x4, fixed_abs, tag = 'smem constant byte address 0x4 - core index']
  #allocation1 [shape = 'u32[144,128]{1,0:T(1,128)}', space=vmem, size = 0x12000, scoped, tag = 'internal scratch']
  #allocation2 [shape = 'f32[16,32]{1,0:T(8,128)}', space=vmem, size = 0x2000, scoped, tag = 'scratch operand']
  %s0 = inlined_call_operand.vmem [shape: f32[16,32], index: 0, kind: input, shape index: {}]
  %s1 = inlined_call_operand.vmem [shape: f32[32,32], index: 1, kind: input, shape index: {}]
  %s2 = inlined_call_operand.vmem [shape: f32[1,32], index: 2, kind: input, shape index: {}]
  %s3 = inlined_call_operand.vmem [shape: f32[16,32], index: 3, kind: output, shape index: {}]
  %s4 = sld [smem:[#allocation0]]
  $region30: #{rnn_lm_forward.5} parent=0
    _
  %s6 = ssub.s32 1, %s4
  %s7 = scalar_select 0, %s6, %s4
  // Predicated region
  $region2: #{rnn_lm_forward.5} parent=0 // pred_check
    _
  $region3: #{rnn_lm_forward.5} parent=0 // pred_check_branch
    %9 = sbr.rel (0) target = $region5
  $region4: #{rnn_lm_forward.5} parent=0 // pred_region
    _
  $region5: #{rnn_lm_forward.5} parent=0 // pred_fallthru
    _
  // Predicated region
  $region6: #{rnn_lm_forward.5} parent=0 // pred_check
    _
  $region7: #{rnn_lm_forward.5} parent=0 // pred_check_branch
    %11 = sbr.rel (0) target = $region9
  $region8: #{rnn_lm_forward.5} parent=0 // pred_region
    _
  $region9: #{rnn_lm_forward.5} parent=0 // pred_fallthru
    _
  // Predicated region
  $region10: #{rnn_lm_forward.5} parent=0 // pred_check
    _
  $region11: #{rnn_lm_forward.5} parent=0 // pred_check_branch
    %13 = sbr.rel (0) target = $region13
  $region12: #{rnn_lm_forward.5} parent=0 // pred_region
    _
  $region13: #{rnn_lm_forward.5} parent=0 // pred_fallthru
    _
  %p14 = scmp.eq.s32.totalorder 0, 0
  // Predicated region
  $region14: #{rnn_lm_forward.5} parent=0 // pred_check
    %p15 = pneg %p14
  $region15: #{rnn_lm_forward.5} parent=0 // pred_check_branch
    %17 = sbr.rel (%p15) target = $region17
  $region16: #{rnn_lm_forward.5} parent=0 // pred_region
    %vm18 = vcmask 261120
    %19 = vst.msk [vmem:[#allocation2] sm:$0xff] %vm18, 0.0
    %20 = vst.msk [vmem:[#allocation2 + $0x8] sm:$0xff] %vm18, 0.0
  $region17: #{rnn_lm_forward.5} parent=0 // pred_fallthru
    _
  %v21 = vld [vmem:[#allocation2] sm:$0xff]
  %v22 = vld [vmem:[#allocation2 + $0x8] sm:$0xff]
  %v23 = vld [vmem:[%s0] sm:$0xff]
  %v24 = vld [vmem:[%s0 + $0x8] sm:$0xff]
  %v25 = vld [vmem:[%s1] sm:$0xff]
  %v26 = vld [vmem:[%s1 + $0x8] sm:$0xff]
  %v27 = vld [vmem:[%s1 + $0x10] sm:$0xff]
  %v28 = vld [vmem:[%s1 + $0x18] sm:$0xff]
  %vm29 = vcmask 261120
  %v31 = vsel %vm29, %v23, 0
  %v34 = vsel %vm29, %v24, 0
  %36 = vmatprep.subr.mxu0 0.0
  %37 = vmatpush1.msra.mxu0 0.0
  %38 = vmatprep.subr.mxu0 0.0
  %39 = vmatpush1.msra.mxu0 0.0
  %40 = vmatprep.subr.mxu0 0.0
  %41 = vmatpush1.msra.mxu0 0.0
  %42 = vmatprep.subr.mxu0 0.0
  %43 = vmatpush1.msra.mxu0 0.0
  %44 = vmatprep.subr.mxu0 0.0
  %45 = vmatpush1.msra.mxu0 0.0
  %46 = vmatprep.subr.mxu0 0.0
  %47 = vmatpush1.msra.mxu0 0.0
  %48 = vmatprep.subr.mxu0 0.0
  %49 = vmatpush1.msra.mxu0 0.0
  %50 = vmatprep.subr.mxu0 0.0
  %51 = vmatpush1.msra.mxu0 0.0
  %52 = vmatprep.subr.mxu0 0.0
  %53 = vmatpush1.msra.mxu0 0.0
  %54 = vmatprep.subr.mxu0 0.0
  %55 = vmatpush1.msra.mxu0 0.0
  %56 = vmatprep.subr.mxu0 0.0
  %57 = vmatpush1.msra.mxu0 0.0
  %58 = vmatprep.subr.mxu0 0.0
  %59 = vmatpush1.msra.mxu0 0.0
  %60 = vmatprep.subr.mxu0 0.0
  %61 = vmatpush1.msra.mxu0 %v28
  %62 = vmatprep.subr.mxu0 0.0
  %63 = vmatpush1.msra.mxu0 %v27
  %64 = vmatprep.subr.mxu0 0.0
  %65 = vmatpush1.msra.mxu0 %v26
  %66 = vmatprep.subr.mxu0 0.0
  %67 = vmatpush1.msra.mxu0 %v25
  %68 = vmatprep.subr.mxu0 0.0
  %69 = vmatpush2.msra.mxu0 0.0
  %70 = vmatprep.subr.mxu0 0.0
  %71 = vmatpush2.msra.mxu0 0.0
  %72 = vmatprep.subr.mxu0 0.0
  %73 = vmatpush2.msra.mxu0 0.0
  %74 = vmatprep.subr.mxu0 0.0
  %75 = vmatpush2.msra.mxu0 0.0
  %76 = vmatprep.subr.mxu0 0.0
  %77 = vmatpush2.msra.mxu0 0.0
  %78 = vmatprep.subr.mxu0 0.0
  %79 = vmatpush2.msra.mxu0 0.0
  %80 = vmatprep.subr.mxu0 0.0
  %81 = vmatpush2.msra.mxu0 0.0
  %82 = vmatprep.subr.mxu0 0.0
  %83 = vmatpush2.msra.mxu0 0.0
  %84 = vmatprep.subr.mxu0 0.0
  %85 = vmatpush2.msra.mxu0 0.0
  %86 = vmatprep.subr.mxu0 0.0
  %87 = vmatpush2.msra.mxu0 0.0
  %88 = vmatprep.subr.mxu0 0.0
  %89 = vmatpush2.msra.mxu0 0.0
  %90 = vmatprep.subr.mxu0 0.0
  %91 = vmatpush2.msra.mxu0 0.0
  %92 = vmatprep.subr.mxu0 0.0
  %93 = vmatpush2.msra.mxu0 0.0
  %94 = vmatprep.subr.mxu0 0.0
  %95 = vmatpush2.msra.mxu0 0.0
  %96 = vmatprep.subr.mxu0 0.0
  %97 = vmatpush2.msra.mxu0 0.0
  %98 = vmatprep.subr.mxu0 0.0
  %99 = vmatpush2.msra.mxu0 0.0
  %100 = vmatprep.mubr.f32.mxu0 0.0
  %101 = vmatmul.mubr.f32.gmra.mxu0 %v31
  %v102 = vpop.f32.mrf.mxu0
  %v103 = vadd.f32 0.0, %v102
  %v104 = vpop.f32.mrf.mxu0
  %105 = vmatprep.mubr.f32.mxu0 0.0
  %106 = vmatmul.mubr.f32.gmra.mxu0 %v34
  %v107 = vpop.f32.mrf.mxu0
  %v108 = vadd.f32 0.0, %v107
  %v109 = vpop.f32.mrf.mxu0
  %110 = vdwg.mxu0
  %v111 = vadd.f32 %v21, %v103
  %v112 = vadd.f32 %v22, %v108
  %113 = vst.msk [vmem:[#allocation2] sm:$0xff] %vm29, %v111
  %114 = vst.msk [vmem:[#allocation2 + $0x8] sm:$0xff] %vm29, %v112
  // Predicated region
  $region18: #{rnn_lm_forward.5} parent=0 // pred_check
    %p115 = pneg %p14
  $region19: #{rnn_lm_forward.5} parent=0 // pred_check_branch
    %117 = sbr.rel (%p115) target = $region21
  $region20: #{rnn_lm_forward.5} parent=0 // pred_region
    %v118 = vld [vmem:[#allocation2] sm:$0xff]
    %v119 = vld [vmem:[#allocation2 + $0x8] sm:$0xff]
    %v120 = vld [vmem:[%s2] sm:$0x1]
    %v122 = vlaneseq
    %v123 = vshrl.u32 %v122, 7
    %v124 = vsub.s32 0, %v123
    %v125 = vrot.slane %v120, %v124
    %v127 = vadd.f32 %v118, %v125
    %v128 = vadd.f32 %v119, %v125
    %129 = vst.msk [vmem:[%s3] sm:$0xff] %vm29, %v127
    %130 = vst.msk [vmem:[%s3 + $0x8] sm:$0xff] %vm29, %v128
  $region21: #{rnn_lm_forward.5} parent=0 // pred_fallthru
    _
  // Predicated region
  $region22: #{rnn_lm_forward.5} parent=0 // pred_check
    _
  $region23: #{rnn_lm_forward.5} parent=0 // pred_check_branch
    %132 = sbr.rel (0) target = $region25
  $region24: #{rnn_lm_forward.5} parent=0 // pred_region
    _
  $region25: #{rnn_lm_forward.5} parent=0 // pred_fallthru
    _
  // Predicated region
  $region26: #{rnn_lm_forward.5} parent=0 // pred_check
    _
  $region27: #{rnn_lm_forward.5} parent=0 // pred_check_branch
    %134 = sbr.rel (0) target = $region29
  $region28: #{rnn_lm_forward.5} parent=0 // pred_region
    _
  $region29: #{rnn_lm_forward.5} parent=0 // pred_fallthru
    _

// kernel: rnn_lm_forward.6
$region0: #{rnn_lm_forward.6}
  #allocation0 [shape = 'u32[]', space=smem, size = 0x4, offset = 0x4, fixed_abs, tag = 'smem constant byte address 0x4 - core index']
  #allocation1 [shape = 'u32[144,128]{1,0:T(1,128)}', space=vmem, size = 0x12000, scoped, tag = 'internal scratch']
  #allocation2 [shape = 'f32[2,32]{1,0:T(2,128)}', space=vmem, size = 0x400, scoped, tag = 'scratch operand']
  %s0 = inlined_call_operand.vmem [shape: f32[8,2,32], index: 0, kind: input, shape index: {}]
  %s1 = inlined_call_operand.vmem [shape: f32[2,32], index: 1, kind: input, shape index: {}]
  %s2 = inlined_call_operand.vmem [shape: f32[32,32], index: 2, kind: input, shape index: {}]
  %s3 = inlined_call_operand.vmem [shape: f32[8,2,32], index: 3, kind: output, shape index: {}]
  %s4 = sld [smem:[#allocation0]]
  $region26: #{rnn_lm_forward.6} parent=0
    _
  %s6 = ssub.s32 1, %s4
  %s7 = scalar_select 0, %s6, %s4
  // Predicated region
  $region2: #{rnn_lm_forward.6} parent=0 // pred_check
    _
  $region3: #{rnn_lm_forward.6} parent=0 // pred_check_branch
    %9 = sbr.rel (0) target = $region5
  $region4: #{rnn_lm_forward.6} parent=0 // pred_region
    _
  $region5: #{rnn_lm_forward.6} parent=0 // pred_fallthru
    _
  // Predicated region
  $region6: #{rnn_lm_forward.6} parent=0 // pred_check
    _
  $region7: #{rnn_lm_forward.6} parent=0 // pred_check_branch
    %11 = sbr.rel (0) target = $region9
  $region8: #{rnn_lm_forward.6} parent=0 // pred_region
    _
  $region9: #{rnn_lm_forward.6} parent=0 // pred_fallthru
    _
  // Predicated region
  $region10: #{rnn_lm_forward.6} parent=0 // pred_check
    _
  $region11: #{rnn_lm_forward.6} parent=0 // pred_check_branch
    %13 = sbr.rel (0) target = $region13
  $region12: #{rnn_lm_forward.6} parent=0 // pred_region
    _
  $region13: #{rnn_lm_forward.6} parent=0 // pred_fallthru
    _
  %p14 = scmp.eq.s32.totalorder 0, 0
  // Predicated region
  $region14: #{rnn_lm_forward.6} parent=0 // pred_check
    %p15 = pneg %p14
  $region15: #{rnn_lm_forward.6} parent=0 // pred_check_branch
    %17 = sbr.rel (%p15) target = $region17
  $region16: #{rnn_lm_forward.6} parent=0 // pred_region
    %v18 = vld [vmem:[%s1] sm:$0x3]
    %vm19 = vcmask 254976
    %20 = vst.msk [vmem:[#allocation2] sm:$0x3] %vm19, %v18
  $region17: #{rnn_lm_forward.6} parent=0 // pred_fallthru
    _
  %v21 = vld [vmem:[#allocation2] sm:$0x3]
  %v22 = vld [vmem:[%s0] sm:$0x3]
  %v23 = vld [vmem:[%s2] sm:$0xff]
  %v24 = vld [vmem:[%s2 + $0x8] sm:$0xff]
  %v25 = vld [vmem:[%s2 + $0x10] sm:$0xff]
  %v26 = vld [vmem:[%s2 + $0x18] sm:$0xff]
  %vm27 = vcmask 261120
  %v29 = vsel %vm27, %v21, 0
  %31 = vmatprep.subr.mxu0 0.0
  %32 = vmatpush1.msra.mxu0 0.0
  %33 = vmatprep.subr.mxu0 0.0
  %34 = vmatpush1.msra.mxu0 0.0
  %35 = vmatprep.subr.mxu0 0.0
  %36 = vmatpush1.msra.mxu0 0.0
  %37 = vmatprep.subr.mxu0 0.0
  %38 = vmatpush1.msra.mxu0 0.0
  %39 = vmatprep.subr.mxu0 0.0
  %40 = vmatpush1.msra.mxu0 0.0
  %41 = vmatprep.subr.mxu0 0.0
  %42 = vmatpush1.msra.mxu0 0.0
  %43 = vmatprep.subr.mxu0 0.0
  %44 = vmatpush1.msra.mxu0 0.0
  %45 = vmatprep.subr.mxu0 0.0
  %46 = vmatpush1.msra.mxu0 0.0
  %47 = vmatprep.subr.mxu0 0.0
  %48 = vmatpush1.msra.mxu0 0.0
  %49 = vmatprep.subr.mxu0 0.0
  %50 = vmatpush1.msra.mxu0 0.0
  %51 = vmatprep.subr.mxu0 0.0
  %52 = vmatpush1.msra.mxu0 0.0
  %53 = vmatprep.subr.mxu0 0.0
  %54 = vmatpush1.msra.mxu0 0.0
  %55 = vmatprep.subr.mxu0 0.0
  %56 = vmatpush1.msra.mxu0 %v26
  %57 = vmatprep.subr.mxu0 0.0
  %58 = vmatpush1.msra.mxu0 %v25
  %59 = vmatprep.subr.mxu0 0.0
  %60 = vmatpush1.msra.mxu0 %v24
  %61 = vmatprep.subr.mxu0 0.0
  %62 = vmatpush1.msra.mxu0 %v23
  %63 = vmatprep.subr.mxu0 0.0
  %64 = vmatpush2.msra.mxu0 0.0
  %65 = vmatprep.subr.mxu0 0.0
  %66 = vmatpush2.msra.mxu0 0.0
  %67 = vmatprep.subr.mxu0 0.0
  %68 = vmatpush2.msra.mxu0 0.0
  %69 = vmatprep.subr.mxu0 0.0
  %70 = vmatpush2.msra.mxu0 0.0
  %71 = vmatprep.subr.mxu0 0.0
  %72 = vmatpush2.msra.mxu0 0.0
  %73 = vmatprep.subr.mxu0 0.0
  %74 = vmatpush2.msra.mxu0 0.0
  %75 = vmatprep.subr.mxu0 0.0
  %76 = vmatpush2.msra.mxu0 0.0
  %77 = vmatprep.subr.mxu0 0.0
  %78 = vmatpush2.msra.mxu0 0.0
  %79 = vmatprep.subr.mxu0 0.0
  %80 = vmatpush2.msra.mxu0 0.0
  %81 = vmatprep.subr.mxu0 0.0
  %82 = vmatpush2.msra.mxu0 0.0
  %83 = vmatprep.subr.mxu0 0.0
  %84 = vmatpush2.msra.mxu0 0.0
  %85 = vmatprep.subr.mxu0 0.0
  %86 = vmatpush2.msra.mxu0 0.0
  %87 = vmatprep.subr.mxu0 0.0
  %88 = vmatpush2.msra.mxu0 0.0
  %89 = vmatprep.subr.mxu0 0.0
  %90 = vmatpush2.msra.mxu0 0.0
  %91 = vmatprep.subr.mxu0 0.0
  %92 = vmatpush2.msra.mxu0 0.0
  %93 = vmatprep.subr.mxu0 0.0
  %94 = vmatpush2.msra.mxu0 0.0
  %95 = vmatprep.mubr.f32.mxu0 0.0
  %96 = vmatmul.mubr.f32.gmra.mxu0 %v29
  %v97 = vpop.f32.mrf.mxu0
  %v98 = vadd.f32 0.0, %v97
  %v99 = vpop.f32.mrf.mxu0
  %100 = vdwg.mxu0
  %v101 = vadd.f32 %v22, %v98
  %v102 = vtanh.pop %v101
  %vm103 = vcmask 254976
  %104 = vst.msk [vmem:[%s3] sm:$0x3] %vm103, %v102
  %s105 = scalar_lea.vmem %s0, 2
  %v106 = vld [vmem:[%s105] sm:$0x3]
  %v107 = vld [vmem:[%s2] sm:$0xff]
  %v108 = vld [vmem:[%s2 + $0x8] sm:$0xff]
  %v109 = vld [vmem:[%s2 + $0x10] sm:$0xff]
  %v110 = vld [vmem:[%s2 + $0x18] sm:$0xff]
  %v112 = vsel %vm27, %v102, 0
  %114 = vmatprep.subr.mxu0 0.0
  %115 = vmatpush1.msra.mxu0 0.0
  %116 = vmatprep.subr.mxu0 0.0
  %117 = vmatpush1.msra.mxu0 0.0
  %118 = vmatprep.subr.mxu0 0.0
  %119 = vmatpush1.msra.mxu0 0.0
  %120 = vmatprep.subr.mxu0 0.0
  %121 = vmatpush1.msra.mxu0 0.0
  %122 = vmatprep.subr.mxu0 0.0
  %123 = vmatpush1.msra.mxu0 0.0
  %124 = vmatprep.subr.mxu0 0.0
  %125 = vmatpush1.msra.mxu0 0.0
  %126 = vmatprep.subr.mxu0 0.0
  %127 = vmatpush1.msra.mxu0 0.0
  %128 = vmatprep.subr.mxu0 0.0
  %129 = vmatpush1.msra.mxu0 0.0
  %130 = vmatprep.subr.mxu0 0.0
  %131 = vmatpush1.msra.mxu0 0.0
  %132 = vmatprep.subr.mxu0 0.0
  %133 = vmatpush1.msra.mxu0 0.0
  %134 = vmatprep.subr.mxu0 0.0
  %135 = vmatpush1.msra.mxu0 0.0
  %136 = vmatprep.subr.mxu0 0.0
  %137 = vmatpush1.msra.mxu0 0.0
  %138 = vmatprep.subr.mxu0 0.0
  %139 = vmatpush1.msra.mxu0 %v110
  %140 = vmatprep.subr.mxu0 0.0
  %141 = vmatpush1.msra.mxu0 %v109
  %142 = vmatprep.subr.mxu0 0.0
  %143 = vmatpush1.msra.mxu0 %v108
  %144 = vmatprep.subr.mxu0 0.0
  %145 = vmatpush1.msra.mxu0 %v107
  %146 = vmatprep.subr.mxu0 0.0
  %147 = vmatpush2.msra.mxu0 0.0
  %148 = vmatprep.subr.mxu0 0.0
  %149 = vmatpush2.msra.mxu0 0.0
  %150 = vmatprep.subr.mxu0 0.0
  %151 = vmatpush2.msra.mxu0 0.0
  %152 = vmatprep.subr.mxu0 0.0
  %153 = vmatpush2.msra.mxu0 0.0
  %154 = vmatprep.subr.mxu0 0.0
  %155 = vmatpush2.msra.mxu0 0.0
  %156 = vmatprep.subr.mxu0 0.0
  %157 = vmatpush2.msra.mxu0 0.0
  %158 = vmatprep.subr.mxu0 0.0
  %159 = vmatpush2.msra.mxu0 0.0
  %160 = vmatprep.subr.mxu0 0.0
  %161 = vmatpush2.msra.mxu0 0.0
  %162 = vmatprep.subr.mxu0 0.0
  %163 = vmatpush2.msra.mxu0 0.0
  %164 = vmatprep.subr.mxu0 0.0
  %165 = vmatpush2.msra.mxu0 0.0
  %166 = vmatprep.subr.mxu0 0.0
  %167 = vmatpush2.msra.mxu0 0.0
  %168 = vmatprep.subr.mxu0 0.0
  %169 = vmatpush2.msra.mxu0 0.0
  %170 = vmatprep.subr.mxu0 0.0
  %171 = vmatpush2.msra.mxu0 0.0
  %172 = vmatprep.subr.mxu0 0.0
  %173 = vmatpush2.msra.mxu0 0.0
  %174 = vmatprep.subr.mxu0 0.0
  %175 = vmatpush2.msra.mxu0 0.0
  %176 = vmatprep.subr.mxu0 0.0
  %177 = vmatpush2.msra.mxu0 0.0
  %178 = vmatprep.mubr.f32.mxu0 0.0
  %179 = vmatmul.mubr.f32.gmra.mxu0 %v112
  %v180 = vpop.f32.mrf.mxu0
  %v181 = vadd.f32 0.0, %v180
  %v182 = vpop.f32.mrf.mxu0
  %183 = vdwg.mxu0
  %v184 = vadd.f32 %v106, %v181
  %v185 = vtanh.pop %v184
  %s186 = scalar_lea.vmem %s3, 2
  %187 = vst.msk [vmem:[%s186] sm:$0x3] %vm103, %v185
  %s188 = scalar_lea.vmem %s0, 4
  %v189 = vld [vmem:[%s188] sm:$0x3]
  %v190 = vld [vmem:[%s2] sm:$0xff]
  %v191 = vld [vmem:[%s2 + $0x8] sm:$0xff]
  %v192 = vld [vmem:[%s2 + $0x10] sm:$0xff]
  %v193 = vld [vmem:[%s2 + $0x18] sm:$0xff]
  %v195 = vsel %vm27, %v185, 0
  %197 = vmatprep.subr.mxu0 0.0
  %198 = vmatpush1.msra.mxu0 0.0
  %199 = vmatprep.subr.mxu0 0.0
  %200 = vmatpush1.msra.mxu0 0.0
  %201 = vmatprep.subr.mxu0 0.0
  %202 = vmatpush1.msra.mxu0 0.0
  %203 = vmatprep.subr.mxu0 0.0
  %204 = vmatpush1.msra.mxu0 0.0
  %205 = vmatprep.subr.mxu0 0.0
  %206 = vmatpush1.msra.mxu0 0.0
  %207 = vmatprep.subr.mxu0 0.0
  %208 = vmatpush1.msra.mxu0 0.0
  %209 = vmatprep.subr.mxu0 0.0
  %210 = vmatpush1.msra.mxu0 0.0
  %211 = vmatprep.subr.mxu0 0.0
  %212 = vmatpush1.msra.mxu0 0.0
  %213 = vmatprep.subr.mxu0 0.0
  %214 = vmatpush1.msra.mxu0 0.0
  %215 = vmatprep.subr.mxu0 0.0
  %216 = vmatpush1.msra.mxu0 0.0
  %217 = vmatprep.subr.mxu0 0.0
  %218 = vmatpush1.msra.mxu0 0.0
  %219 = vmatprep.subr.mxu0 0.0
  %220 = vmatpush1.msra.mxu0 0.0
  %221 = vmatprep.subr.mxu0 0.0
  %222 = vmatpush1.msra.mxu0 %v193
  %223 = vmatprep.subr.mxu0 0.0
  %224 = vmatpush1.msra.mxu0 %v192
  %225 = vmatprep.subr.mxu0 0.0
  %226 = vmatpush1.msra.mxu0 %v191
  %227 = vmatprep.subr.mxu0 0.0
  %228 = vmatpush1.msra.mxu0 %v190
  %229 = vmatprep.subr.mxu0 0.0
  %230 = vmatpush2.msra.mxu0 0.0
  %231 = vmatprep.subr.mxu0 0.0
  %232 = vmatpush2.msra.mxu0 0.0
  %233 = vmatprep.subr.mxu0 0.0
  %234 = vmatpush2.msra.mxu0 0.0
  %235 = vmatprep.subr.mxu0 0.0
  %236 = vmatpush2.msra.mxu0 0.0
  %237 = vmatprep.subr.mxu0 0.0
  %238 = vmatpush2.msra.mxu0 0.0
  %239 = vmatprep.subr.mxu0 0.0
  %240 = vmatpush2.msra.mxu0 0.0
  %241 = vmatprep.subr.mxu0 0.0
  %242 = vmatpush2.msra.mxu0 0.0
  %243 = vmatprep.subr.mxu0 0.0
  %244 = vmatpush2.msra.mxu0 0.0
  %245 = vmatprep.subr.mxu0 0.0
  %246 = vmatpush2.msra.mxu0 0.0
  %247 = vmatprep.subr.mxu0 0.0
  %248 = vmatpush2.msra.mxu0 0.0
  %249 = vmatprep.subr.mxu0 0.0
  %250 = vmatpush2.msra.mxu0 0.0
  %251 = vmatprep.subr.mxu0 0.0
  %252 = vmatpush2.msra.mxu0 0.0
  %253 = vmatprep.subr.mxu0 0.0
  %254 = vmatpush2.msra.mxu0 0.0
  %255 = vmatprep.subr.mxu0 0.0
  %256 = vmatpush2.msra.mxu0 0.0
  %257 = vmatprep.subr.mxu0 0.0
  %258 = vmatpush2.msra.mxu0 0.0
  %259 = vmatprep.subr.mxu0 0.0
  %260 = vmatpush2.msra.mxu0 0.0
  %261 = vmatprep.mubr.f32.mxu0 0.0
  %262 = vmatmul.mubr.f32.gmra.mxu0 %v195
  %v263 = vpop.f32.mrf.mxu0
  %v264 = vadd.f32 0.0, %v263
  %v265 = vpop.f32.mrf.mxu0
  %266 = vdwg.mxu0
  %v267 = vadd.f32 %v189, %v264
  %v268 = vtanh.pop %v267
  %s269 = scalar_lea.vmem %s3, 4
  %270 = vst.msk [vmem:[%s269] sm:$0x3] %vm103, %v268
  %s271 = scalar_lea.vmem %s0, 6
  %v272 = vld [vmem:[%s271] sm:$0x3]
  %v273 = vld [vmem:[%s2] sm:$0xff]
  %v274 = vld [vmem:[%s2 + $0x8] sm:$0xff]
  %v275 = vld [vmem:[%s2 + $0x10] sm:$0xff]
  %v276 = vld [vmem:[%s2 + $0x18] sm:$0xff]
  %v278 = vsel %vm27, %v268, 0
  %280 = vmatprep.subr.mxu0 0.0
  %281 = vmatpush1.msra.mxu0 0.0
  %282 = vmatprep.subr.mxu0 0.0
  %283 = vmatpush1.msra.mxu0 0.0
  %284 = vmatprep.subr.mxu0 0.0
  %285 = vmatpush1.msra.mxu0 0.0
  %286 = vmatprep.subr.mxu0 0.0
  %287 = vmatpush1.msra.mxu0 0.0
  %288 = vmatprep.subr.mxu0 0.0
  %289 = vmatpush1.msra.mxu0 0.0
  %290 = vmatprep.subr.mxu0 0.0
  %291 = vmatpush1.msra.mxu0 0.0
  %292 = vmatprep.subr.mxu0 0.0
  %293 = vmatpush1.msra.mxu0 0.0
  %294 = vmatprep.subr.mxu0 0.0
  %295 = vmatpush1.msra.mxu0 0.0
  %296 = vmatprep.subr.mxu0 0.0
  %297 = vmatpush1.msra.mxu0 0.0
  %298 = vmatprep.subr.mxu0 0.0
  %299 = vmatpush1.msra.mxu0 0.0
  %300 = vmatprep.subr.mxu0 0.0
  %301 = vmatpush1.msra.mxu0 0.0
  %302 = vmatprep.subr.mxu0 0.0
  %303 = vmatpush1.msra.mxu0 0.0
  %304 = vmatprep.subr.mxu0 0.0
  %305 = vmatpush1.msra.mxu0 %v276
  %306 = vmatprep.subr.mxu0 0.0
  %307 = vmatpush1.msra.mxu0 %v275
  %308 = vmatprep.subr.mxu0 0.0
  %309 = vmatpush1.msra.mxu0 %v274
  %310 = vmatprep.subr.mxu0 0.0
  %311 = vmatpush1.msra.mxu0 %v273
  %312 = vmatprep.subr.mxu0 0.0
  %313 = vmatpush2.msra.mxu0 0.0
  %314 = vmatprep.subr.mxu0 0.0
  %315 = vmatpush2.msra.mxu0 0.0
  %316 = vmatprep.subr.mxu0 0.0
  %317 = vmatpush2.msra.mxu0 0.0
  %318 = vmatprep.subr.mxu0 0.0
  %319 = vmatpush2.msra.mxu0 0.0
  %320 = vmatprep.subr.mxu0 0.0
  %321 = vmatpush2.msra.mxu0 0.0
  %322 = vmatprep.subr.mxu0 0.0
  %323 = vmatpush2.msra.mxu0 0.0
  %324 = vmatprep.subr.mxu0 0.0
  %325 = vmatpush2.msra.mxu0 0.0
  %326 = vmatprep.subr.mxu0 0.0
  %327 = vmatpush2.msra.mxu0 0.0
  %328 = vmatprep.subr.mxu0 0.0
  %329 = vmatpush2.msra.mxu0 0.0
  %330 = vmatprep.subr.mxu0 0.0
  %331 = vmatpush2.msra.mxu0 0.0
  %332 = vmatprep.subr.mxu0 0.0
  %333 = vmatpush2.msra.mxu0 0.0
  %334 = vmatprep.subr.mxu0 0.0
  %335 = vmatpush2.msra.mxu0 0.0
  %336 = vmatprep.subr.mxu0 0.0
  %337 = vmatpush2.msra.mxu0 0.0
  %338 = vmatprep.subr.mxu0 0.0
  %339 = vmatpush2.msra.mxu0 0.0
  %340 = vmatprep.subr.mxu0 0.0
  %341 = vmatpush2.msra.mxu0 0.0
  %342 = vmatprep.subr.mxu0 0.0
  %343 = vmatpush2.msra.mxu0 0.0
  %344 = vmatprep.mubr.f32.mxu0 0.0
  %345 = vmatmul.mubr.f32.gmra.mxu0 %v278
  %v346 = vpop.f32.mrf.mxu0
  %v347 = vadd.f32 0.0, %v346
  %v348 = vpop.f32.mrf.mxu0
  %349 = vdwg.mxu0
  %v350 = vadd.f32 %v272, %v347
  %v351 = vtanh.pop %v350
  %s352 = scalar_lea.vmem %s3, 6
  %353 = vst.msk [vmem:[%s352] sm:$0x3] %vm103, %v351
  %s354 = scalar_lea.vmem %s0, 8
  %v355 = vld [vmem:[%s354] sm:$0x3]
  %v356 = vld [vmem:[%s2] sm:$0xff]
  %v357 = vld [vmem:[%s2 + $0x8] sm:$0xff]
  %v358 = vld [vmem:[%s2 + $0x10] sm:$0xff]
  %v359 = vld [vmem:[%s2 + $0x18] sm:$0xff]
  %v361 = vsel %vm27, %v351, 0
  %363 = vmatprep.subr.mxu0 0.0
  %364 = vmatpush1.msra.mxu0 0.0
  %365 = vmatprep.subr.mxu0 0.0
  %366 = vmatpush1.msra.mxu0 0.0
  %367 = vmatprep.subr.mxu0 0.0
  %368 = vmatpush1.msra.mxu0 0.0
  %369 = vmatprep.subr.mxu0 0.0
  %370 = vmatpush1.msra.mxu0 0.0
  %371 = vmatprep.subr.mxu0 0.0
  %372 = vmatpush1.msra.mxu0 0.0
  %373 = vmatprep.subr.mxu0 0.0
  %374 = vmatpush1.msra.mxu0 0.0
  %375 = vmatprep.subr.mxu0 0.0
  %376 = vmatpush1.msra.mxu0 0.0
  %377 = vmatprep.subr.mxu0 0.0
  %378 = vmatpush1.msra.mxu0 0.0
  %379 = vmatprep.subr.mxu0 0.0
  %380 = vmatpush1.msra.mxu0 0.0
  %381 = vmatprep.subr.mxu0 0.0
  %382 = vmatpush1.msra.mxu0 0.0
  %383 = vmatprep.subr.mxu0 0.0
  %384 = vmatpush1.msra.mxu0 0.0
  %385 = vmatprep.subr.mxu0 0.0
  %386 = vmatpush1.msra.mxu0 0.0
  %387 = vmatprep.subr.mxu0 0.0
  %388 = vmatpush1.msra.mxu0 %v359
  %389 = vmatprep.subr.mxu0 0.0
  %390 = vmatpush1.msra.mxu0 %v358
  %391 = vmatprep.subr.mxu0 0.0
  %392 = vmatpush1.msra.mxu0 %v357
  %393 = vmatprep.subr.mxu0 0.0
  %394 = vmatpush1.msra.mxu0 %v356
  %395 = vmatprep.subr.mxu0 0.0
  %396 = vmatpush2.msra.mxu0 0.0
  %397 = vmatprep.subr.mxu0 0.0
  %398 = vmatpush2.msra.mxu0 0.0
  %399 = vmatprep.subr.mxu0 0.0
  %400 = vmatpush2.msra.mxu0 0.0
  %401 = vmatprep.subr.mxu0 0.0
  %402 = vmatpush2.msra.mxu0 0.0
  %403 = vmatprep.subr.mxu0 0.0
  %404 = vmatpush2.msra.mxu0 0.0
  %405 = vmatprep.subr.mxu0 0.0
  %406 = vmatpush2.msra.mxu0 0.0
  %407 = vmatprep.subr.mxu0 0.0
  %408 = vmatpush2.msra.mxu0 0.0
  %409 = vmatprep.subr.mxu0 0.0
  %410 = vmatpush2.msra.mxu0 0.0
  %411 = vmatprep.subr.mxu0 0.0
  %412 = vmatpush2.msra.mxu0 0.0
  %413 = vmatprep.subr.mxu0 0.0
  %414 = vmatpush2.msra.mxu0 0.0
  %415 = vmatprep.subr.mxu0 0.0
  %416 = vmatpush2.msra.mxu0 0.0
  %417 = vmatprep.subr.mxu0 0.0
  %418 = vmatpush2.msra.mxu0 0.0
  %419 = vmatprep.subr.mxu0 0.0
  %420 = vmatpush2.msra.mxu0 0.0
  %421 = vmatprep.subr.mxu0 0.0
  %422 = vmatpush2.msra.mxu0 0.0
  %423 = vmatprep.subr.mxu0 0.0
  %424 = vmatpush2.msra.mxu0 0.0
  %425 = vmatprep.subr.mxu0 0.0
  %426 = vmatpush2.msra.mxu0 0.0
  %427 = vmatprep.mubr.f32.mxu0 0.0
  %428 = vmatmul.mubr.f32.gmra.mxu0 %v361
  %v429 = vpop.f32.mrf.mxu0
  %v430 = vadd.f32 0.0, %v429
  %v431 = vpop.f32.mrf.mxu0
  %432 = vdwg.mxu0
  %v433 = vadd.f32 %v355, %v430
  %v434 = vtanh.pop %v433
  %s435 = scalar_lea.vmem %s3, 8
  %436 = vst.msk [vmem:[%s435] sm:$0x3] %vm103, %v434
  %s437 = scalar_lea.vmem %s0, 10
  %v438 = vld [vmem:[%s437] sm:$0x3]
  %v439 = vld [vmem:[%s2] sm:$0xff]
  %v440 = vld [vmem:[%s2 + $0x8] sm:$0xff]
  %v441 = vld [vmem:[%s2 + $0x10] sm:$0xff]
  %v442 = vld [vmem:[%s2 + $0x18] sm:$0xff]
  %v444 = vsel %vm27, %v434, 0
  %446 = vmatprep.subr.mxu0 0.0
  %447 = vmatpush1.msra.mxu0 0.0
  %448 = vmatprep.subr.mxu0 0.0
  %449 = vmatpush1.msra.mxu0 0.0
  %450 = vmatprep.subr.mxu0 0.0
  %451 = vmatpush1.msra.mxu0 0.0
  %452 = vmatprep.subr.mxu0 0.0
  %453 = vmatpush1.msra.mxu0 0.0
  %454 = vmatprep.subr.mxu0 0.0
  %455 = vmatpush1.msra.mxu0 0.0
  %456 = vmatprep.subr.mxu0 0.0
  %457 = vmatpush1.msra.mxu0 0.0
  %458 = vmatprep.subr.mxu0 0.0
  %459 = vmatpush1.msra.mxu0 0.0
  %460 = vmatprep.subr.mxu0 0.0
  %461 = vmatpush1.msra.mxu0 0.0
  %462 = vmatprep.subr.mxu0 0.0
  %463 = vmatpush1.msra.mxu0 0.0
  %464 = vmatprep.subr.mxu0 0.0
  %465 = vmatpush1.msra.mxu0 0.0
  %466 = vmatprep.subr.mxu0 0.0
  %467 = vmatpush1.msra.mxu0 0.0
  %468 = vmatprep.subr.mxu0 0.0
  %469 = vmatpush1.msra.mxu0 0.0
  %470 = vmatprep.subr.mxu0 0.0
  %471 = vmatpush1.msra.mxu0 %v442
  %472 = vmatprep.subr.mxu0 0.0
  %473 = vmatpush1.msra.mxu0 %v441
  %474 = vmatprep.subr.mxu0 0.0
  %475 = vmatpush1.msra.mxu0 %v440
  %476 = vmatprep.subr.mxu0 0.0
  %477 = vmatpush1.msra.mxu0 %v439
  %478 = vmatprep.subr.mxu0 0.0
  %479 = vmatpush2.msra.mxu0 0.0
  %480 = vmatprep.subr.mxu0 0.0
  %481 = vmatpush2.msra.mxu0 0.0
  %482 = vmatprep.subr.mxu0 0.0
  %483 = vmatpush2.msra.mxu0 0.0
  %484 = vmatprep.subr.mxu0 0.0
  %485 = vmatpush2.msra.mxu0 0.0
  %486 = vmatprep.subr.mxu0 0.0
  %487 = vmatpush2.msra.mxu0 0.0
  %488 = vmatprep.subr.mxu0 0.0
  %489 = vmatpush2.msra.mxu0 0.0
  %490 = vmatprep.subr.mxu0 0.0
  %491 = vmatpush2.msra.mxu0 0.0
  %492 = vmatprep.subr.mxu0 0.0
  %493 = vmatpush2.msra.mxu0 0.0
  %494 = vmatprep.subr.mxu0 0.0
  %495 = vmatpush2.msra.mxu0 0.0
  %496 = vmatprep.subr.mxu0 0.0
  %497 = vmatpush2.msra.mxu0 0.0
  %498 = vmatprep.subr.mxu0 0.0
  %499 = vmatpush2.msra.mxu0 0.0
  %500 = vmatprep.subr.mxu0 0.0
  %501 = vmatpush2.msra.mxu0 0.0
  %502 = vmatprep.subr.mxu0 0.0
  %503 = vmatpush2.msra.mxu0 0.0
  %504 = vmatprep.subr.mxu0 0.0
  %505 = vmatpush2.msra.mxu0 0.0
  %506 = vmatprep.subr.mxu0 0.0
  %507 = vmatpush2.msra.mxu0 0.0
  %508 = vmatprep.subr.mxu0 0.0
  %509 = vmatpush2.msra.mxu0 0.0
  %510 = vmatprep.mubr.f32.mxu0 0.0
  %511 = vmatmul.mubr.f32.gmra.mxu0 %v444
  %v512 = vpop.f32.mrf.mxu0
  %v513 = vadd.f32 0.0, %v512
  %v514 = vpop.f32.mrf.mxu0
  %515 = vdwg.mxu0
  %v516 = vadd.f32 %v438, %v513
  %v517 = vtanh.pop %v516
  %s518 = scalar_lea.vmem %s3, 10
  %519 = vst.msk [vmem:[%s518] sm:$0x3] %vm103, %v517
  %s520 = scalar_lea.vmem %s0, 12
  %v521 = vld [vmem:[%s520] sm:$0x3]
  %v522 = vld [vmem:[%s2] sm:$0xff]
  %v523 = vld [vmem:[%s2 + $0x8] sm:$0xff]
  %v524 = vld [vmem:[%s2 + $0x10] sm:$0xff]
  %v525 = vld [vmem:[%s2 + $0x18] sm:$0xff]
  %v527 = vsel %vm27, %v517, 0
  %529 = vmatprep.subr.mxu0 0.0
  %530 = vmatpush1.msra.mxu0 0.0
  %531 = vmatprep.subr.mxu0 0.0
  %532 = vmatpush1.msra.mxu0 0.0
  %533 = vmatprep.subr.mxu0 0.0
  %534 = vmatpush1.msra.mxu0 0.0
  %535 = vmatprep.subr.mxu0 0.0
  %536 = vmatpush1.msra.mxu0 0.0
  %537 = vmatprep.subr.mxu0 0.0
  %538 = vmatpush1.msra.mxu0 0.0
  %539 = vmatprep.subr.mxu0 0.0
  %540 = vmatpush1.msra.mxu0 0.0
  %541 = vmatprep.subr.mxu0 0.0
  %542 = vmatpush1.msra.mxu0 0.0
  %543 = vmatprep.subr.mxu0 0.0
  %544 = vmatpush1.msra.mxu0 0.0
  %545 = vmatprep.subr.mxu0 0.0
  %546 = vmatpush1.msra.mxu0 0.0
  %547 = vmatprep.subr.mxu0 0.0
  %548 = vmatpush1.msra.mxu0 0.0
  %549 = vmatprep.subr.mxu0 0.0
  %550 = vmatpush1.msra.mxu0 0.0
  %551 = vmatprep.subr.mxu0 0.0
  %552 = vmatpush1.msra.mxu0 0.0
  %553 = vmatprep.subr.mxu0 0.0
  %554 = vmatpush1.msra.mxu0 %v525
  %555 = vmatprep.subr.mxu0 0.0
  %556 = vmatpush1.msra.mxu0 %v524
  %557 = vmatprep.subr.mxu0 0.0
  %558 = vmatpush1.msra.mxu0 %v523
  %559 = vmatprep.subr.mxu0 0.0
  %560 = vmatpush1.msra.mxu0 %v522
  %561 = vmatprep.subr.mxu0 0.0
  %562 = vmatpush2.msra.mxu0 0.0
  %563 = vmatprep.subr.mxu0 0.0
  %564 = vmatpush2.msra.mxu0 0.0
  %565 = vmatprep.subr.mxu0 0.0
  %566 = vmatpush2.msra.mxu0 0.0
  %567 = vmatprep.subr.mxu0 0.0
  %568 = vmatpush2.msra.mxu0 0.0
  %569 = vmatprep.subr.mxu0 0.0
  %570 = vmatpush2.msra.mxu0 0.0
  %571 = vmatprep.subr.mxu0 0.0
  %572 = vmatpush2.msra.mxu0 0.0
  %573 = vmatprep.subr.mxu0 0.0
  %574 = vmatpush2.msra.mxu0 0.0
  %575 = vmatprep.subr.mxu0 0.0
  %576 = vmatpush2.msra.mxu0 0.0
  %577 = vmatprep.subr.mxu0 0.0
  %578 = vmatpush2.msra.mxu0 0.0
  %579 = vmatprep.subr.mxu0 0.0
  %580 = vmatpush2.msra.mxu0 0.0
  %581 = vmatprep.subr.mxu0 0.0
  %582 = vmatpush2.msra.mxu0 0.0
  %583 = vmatprep.subr.mxu0 0.0
  %584 = vmatpush2.msra.mxu0 0.0
  %585 = vmatprep.subr.mxu0 0.0
  %586 = vmatpush2.msra.mxu0 0.0
  %587 = vmatprep.subr.mxu0 0.0
  %588 = vmatpush2.msra.mxu0 0.0
  %589 = vmatprep.subr.mxu0 0.0
  %590 = vmatpush2.msra.mxu0 0.0
  %591 = vmatprep.subr.mxu0 0.0
  %592 = vmatpush2.msra.mxu0 0.0
  %593 = vmatprep.mubr.f32.mxu0 0.0
  %594 = vmatmul.mubr.f32.gmra.mxu0 %v527
  %v595 = vpop.f32.mrf.mxu0
  %v596 = vadd.f32 0.0, %v595
  %v597 = vpop.f32.mrf.mxu0
  %598 = vdwg.mxu0
  %v599 = vadd.f32 %v521, %v596
  %v600 = vtanh.pop %v599
  %s601 = scalar_lea.vmem %s3, 12
  %602 = vst.msk [vmem:[%s601] sm:$0x3] %vm103, %v600
  %s603 = scalar_lea.vmem %s0, 14
  %v604 = vld [vmem:[%s603] sm:$0x3]
  %v605 = vld [vmem:[%s2] sm:$0xff]
  %v606 = vld [vmem:[%s2 + $0x8] sm:$0xff]
  %v607 = vld [vmem:[%s2 + $0x10] sm:$0xff]
  %v608 = vld [vmem:[%s2 + $0x18] sm:$0xff]
  %v610 = vsel %vm27, %v600, 0
  %612 = vmatprep.subr.mxu0 0.0
  %613 = vmatpush1.msra.mxu0 0.0
  %614 = vmatprep.subr.mxu0 0.0
  %615 = vmatpush1.msra.mxu0 0.0
  %616 = vmatprep.subr.mxu0 0.0
  %617 = vmatpush1.msra.mxu0 0.0
  %618 = vmatprep.subr.mxu0 0.0
  %619 = vmatpush1.msra.mxu0 0.0
  %620 = vmatprep.subr.mxu0 0.0
  %621 = vmatpush1.msra.mxu0 0.0
  %622 = vmatprep.subr.mxu0 0.0
  %623 = vmatpush1.msra.mxu0 0.0
  %624 = vmatprep.subr.mxu0 0.0
  %625 = vmatpush1.msra.mxu0 0.0
  %626 = vmatprep.subr.mxu0 0.0
  %627 = vmatpush1.msra.mxu0 0.0
  %628 = vmatprep.subr.mxu0 0.0
  %629 = vmatpush1.msra.mxu0 0.0
  %630 = vmatprep.subr.mxu0 0.0
  %631 = vmatpush1.msra.mxu0 0.0
  %632 = vmatprep.subr.mxu0 0.0
  %633 = vmatpush1.msra.mxu0 0.0
  %634 = vmatprep.subr.mxu0 0.0
  %635 = vmatpush1.msra.mxu0 0.0
  %636 = vmatprep.subr.mxu0 0.0
  %637 = vmatpush1.msra.mxu0 %v608
  %638 = vmatprep.subr.mxu0 0.0
  %639 = vmatpush1.msra.mxu0 %v607
  %640 = vmatprep.subr.mxu0 0.0
  %641 = vmatpush1.msra.mxu0 %v606
  %642 = vmatprep.subr.mxu0 0.0
  %643 = vmatpush1.msra.mxu0 %v605
  %644 = vmatprep.subr.mxu0 0.0
  %645 = vmatpush2.msra.mxu0 0.0
  %646 = vmatprep.subr.mxu0 0.0
  %647 = vmatpush2.msra.mxu0 0.0
  %648 = vmatprep.subr.mxu0 0.0
  %649 = vmatpush2.msra.mxu0 0.0
  %650 = vmatprep.subr.mxu0 0.0
  %651 = vmatpush2.msra.mxu0 0.0
  %652 = vmatprep.subr.mxu0 0.0
  %653 = vmatpush2.msra.mxu0 0.0
  %654 = vmatprep.subr.mxu0 0.0
  %655 = vmatpush2.msra.mxu0 0.0
  %656 = vmatprep.subr.mxu0 0.0
  %657 = vmatpush2.msra.mxu0 0.0
  %658 = vmatprep.subr.mxu0 0.0
  %659 = vmatpush2.msra.mxu0 0.0
  %660 = vmatprep.subr.mxu0 0.0
  %661 = vmatpush2.msra.mxu0 0.0
  %662 = vmatprep.subr.mxu0 0.0
  %663 = vmatpush2.msra.mxu0 0.0
  %664 = vmatprep.subr.mxu0 0.0
  %665 = vmatpush2.msra.mxu0 0.0
  %666 = vmatprep.subr.mxu0 0.0
  %667 = vmatpush2.msra.mxu0 0.0
  %668 = vmatprep.subr.mxu0 0.0
  %669 = vmatpush2.msra.mxu0 0.0
  %670 = vmatprep.subr.mxu0 0.0
  %671 = vmatpush2.msra.mxu0 0.0
  %672 = vmatprep.subr.mxu0 0.0
  %673 = vmatpush2.msra.mxu0 0.0
  %674 = vmatprep.subr.mxu0 0.0
  %675 = vmatpush2.msra.mxu0 0.0
  %676 = vmatprep.mubr.f32.mxu0 0.0
  %677 = vmatmul.mubr.f32.gmra.mxu0 %v610
  %v678 = vpop.f32.mrf.mxu0
  %v679 = vadd.f32 0.0, %v678
  %v680 = vpop.f32.mrf.mxu0
  %681 = vdwg.mxu0
  %v682 = vadd.f32 %v604, %v679
  %v683 = vtanh.pop %v682
  %s684 = scalar_lea.vmem %s3, 14
  %685 = vst.msk [vmem:[%s684] sm:$0x3] %vm103, %v683
  %686 = vst.msk [vmem:[#allocation2] sm:$0x3] %vm103, %v683
  // Predicated region
  $region18: #{rnn_lm_forward.6} parent=0 // pred_check
    _
  $region19: #{rnn_lm_forward.6} parent=0 // pred_check_branch
    %688 = sbr.rel (0) target = $region21
  $region20: #{rnn_lm_forward.6} parent=0 // pred_region
    _
  $region21: #{rnn_lm_forward.6} parent=0 // pred_fallthru
    _
  // Predicated region
  $region22: #{rnn_lm_forward.6} parent=0 // pred_check
    _
  $region23: #{rnn_lm_forward.6} parent=0 // pred_check_branch
    %690 = sbr.rel (0) target = $region25
  $region24: #{rnn_lm_forward.6} parent=0 // pred_region
    _
  $region25: #{rnn_lm_forward.6} parent=0 // pred_fallthru
    _

// kernel: rnn_lm_forward.8
$region0: #{rnn_lm_forward.8}
  #allocation0 [shape = 'u32[]', space=smem, size = 0x4, offset = 0x4, fixed_abs, tag = 'smem constant byte address 0x4 - core index']
  #allocation1 [shape = 'u32[144,128]{1,0:T(1,128)}', space=vmem, size = 0x12000, scoped, tag = 'internal scratch']
  #allocation2 [shape = 'f32[2,32]{1,0:T(2,128)}', space=vmem, size = 0x400, scoped, tag = 'scratch operand']
  %s0 = inlined_call_operand.vmem [shape: f32[8,2,32], index: 0, kind: input, shape index: {}]
  %s1 = inlined_call_operand.vmem [shape: f32[2,32], index: 1, kind: input, shape index: {}]
  %s2 = inlined_call_operand.vmem [shape: f32[32,32], index: 2, kind: input, shape index: {}]
  %s3 = inlined_call_operand.vmem [shape: f32[2,8,32], index: 3, kind: output, shape index: {}]
  %s4 = sld [smem:[#allocation0]]
  $region26: #{rnn_lm_forward.8} parent=0
    _
  %s6 = ssub.s32 1, %s4
  %s7 = scalar_select 0, %s6, %s4
  // Predicated region
  $region2: #{rnn_lm_forward.8} parent=0 // pred_check
    _
  $region3: #{rnn_lm_forward.8} parent=0 // pred_check_branch
    %9 = sbr.rel (0) target = $region5
  $region4: #{rnn_lm_forward.8} parent=0 // pred_region
    _
  $region5: #{rnn_lm_forward.8} parent=0 // pred_fallthru
    _
  // Predicated region
  $region6: #{rnn_lm_forward.8} parent=0 // pred_check
    _
  $region7: #{rnn_lm_forward.8} parent=0 // pred_check_branch
    %11 = sbr.rel (0) target = $region9
  $region8: #{rnn_lm_forward.8} parent=0 // pred_region
    _
  $region9: #{rnn_lm_forward.8} parent=0 // pred_fallthru
    _
  // Predicated region
  $region10: #{rnn_lm_forward.8} parent=0 // pred_check
    _
  $region11: #{rnn_lm_forward.8} parent=0 // pred_check_branch
    %13 = sbr.rel (0) target = $region13
  $region12: #{rnn_lm_forward.8} parent=0 // pred_region
    _
  $region13: #{rnn_lm_forward.8} parent=0 // pred_fallthru
    _
  %p14 = scmp.eq.s32.totalorder 0, 0
  // Predicated region
  $region14: #{rnn_lm_forward.8} parent=0 // pred_check
    %p15 = pneg %p14
  $region15: #{rnn_lm_forward.8} parent=0 // pred_check_branch
    %17 = sbr.rel (%p15) target = $region17
  $region16: #{rnn_lm_forward.8} parent=0 // pred_region
    %v18 = vld [vmem:[%s1] sm:$0x3]
    %vm19 = vcmask 254976
    %20 = vst.msk [vmem:[#allocation2] sm:$0x3] %vm19, %v18
  $region17: #{rnn_lm_forward.8} parent=0 // pred_fallthru
    _
  %v21 = vld [vmem:[#allocation2] sm:$0x3]
  %v22 = vld [vmem:[%s0] sm:$0x3]
  %v23 = vld [vmem:[%s2] sm:$0xff]
  %v24 = vld [vmem:[%s2 + $0x8] sm:$0xff]
  %v25 = vld [vmem:[%s2 + $0x10] sm:$0xff]
  %v26 = vld [vmem:[%s2 + $0x18] sm:$0xff]
  %vm27 = vcmask 261120
  %v29 = vsel %vm27, %v21, 0
  %31 = vmatprep.subr.mxu0 0.0
  %32 = vmatpush1.msra.mxu0 0.0
  %33 = vmatprep.subr.mxu0 0.0
  %34 = vmatpush1.msra.mxu0 0.0
  %35 = vmatprep.subr.mxu0 0.0
  %36 = vmatpush1.msra.mxu0 0.0
  %37 = vmatprep.subr.mxu0 0.0
  %38 = vmatpush1.msra.mxu0 0.0
  %39 = vmatprep.subr.mxu0 0.0
  %40 = vmatpush1.msra.mxu0 0.0
  %41 = vmatprep.subr.mxu0 0.0
  %42 = vmatpush1.msra.mxu0 0.0
  %43 = vmatprep.subr.mxu0 0.0
  %44 = vmatpush1.msra.mxu0 0.0
  %45 = vmatprep.subr.mxu0 0.0
  %46 = vmatpush1.msra.mxu0 0.0
  %47 = vmatprep.subr.mxu0 0.0
  %48 = vmatpush1.msra.mxu0 0.0
  %49 = vmatprep.subr.mxu0 0.0
  %50 = vmatpush1.msra.mxu0 0.0
  %51 = vmatprep.subr.mxu0 0.0
  %52 = vmatpush1.msra.mxu0 0.0
  %53 = vmatprep.subr.mxu0 0.0
  %54 = vmatpush1.msra.mxu0 0.0
  %55 = vmatprep.subr.mxu0 0.0
  %56 = vmatpush1.msra.mxu0 %v26
  %57 = vmatprep.subr.mxu0 0.0
  %58 = vmatpush1.msra.mxu0 %v25
  %59 = vmatprep.subr.mxu0 0.0
  %60 = vmatpush1.msra.mxu0 %v24
  %61 = vmatprep.subr.mxu0 0.0
  %62 = vmatpush1.msra.mxu0 %v23
  %63 = vmatprep.subr.mxu0 0.0
  %64 = vmatpush2.msra.mxu0 0.0
  %65 = vmatprep.subr.mxu0 0.0
  %66 = vmatpush2.msra.mxu0 0.0
  %67 = vmatprep.subr.mxu0 0.0
  %68 = vmatpush2.msra.mxu0 0.0
  %69 = vmatprep.subr.mxu0 0.0
  %70 = vmatpush2.msra.mxu0 0.0
  %71 = vmatprep.subr.mxu0 0.0
  %72 = vmatpush2.msra.mxu0 0.0
  %73 = vmatprep.subr.mxu0 0.0
  %74 = vmatpush2.msra.mxu0 0.0
  %75 = vmatprep.subr.mxu0 0.0
  %76 = vmatpush2.msra.mxu0 0.0
  %77 = vmatprep.subr.mxu0 0.0
  %78 = vmatpush2.msra.mxu0 0.0
  %79 = vmatprep.subr.mxu0 0.0
  %80 = vmatpush2.msra.mxu0 0.0
  %81 = vmatprep.subr.mxu0 0.0
  %82 = vmatpush2.msra.mxu0 0.0
  %83 = vmatprep.subr.mxu0 0.0
  %84 = vmatpush2.msra.mxu0 0.0
  %85 = vmatprep.subr.mxu0 0.0
  %86 = vmatpush2.msra.mxu0 0.0
  %87 = vmatprep.subr.mxu0 0.0
  %88 = vmatpush2.msra.mxu0 0.0
  %89 = vmatprep.subr.mxu0 0.0
  %90 = vmatpush2.msra.mxu0 0.0
  %91 = vmatprep.subr.mxu0 0.0
  %92 = vmatpush2.msra.mxu0 0.0
  %93 = vmatprep.subr.mxu0 0.0
  %94 = vmatpush2.msra.mxu0 0.0
  %95 = vmatprep.mubr.f32.mxu0 0.0
  %96 = vmatmul.mubr.f32.gmra.mxu0 %v29
  %v97 = vpop.f32.mrf.mxu0
  %v98 = vadd.f32 0.0, %v97
  %v99 = vpop.f32.mrf.mxu0
  %100 = vdwg.mxu0
  %v101 = vadd.f32 %v22, %v98
  %v102 = vtanh.pop %v101
  %v105 = vunpack.c.l.s4 1966171168
  %v106 = vunpack.c.0.s8 %v105
  %v107 = vlaneseq
  %v108 = vshrl.u32 %v107, 7
  %v109 = vsub.s32 %v106, %v108
  %v110 = vrot.slane %v102, %v109
  %v111 = vcombine.high %v110, %v110
  %v113 = vunpack.c.l.s4 1966171168
  %v114 = vunpack.c.0.s8 %v113
  %v115 = vlaneseq
  %v116 = vshrl.u32 %v115, 7
  %v117 = vsub.s32 %v114, %v116
  %v118 = vrot.slane %v110, %v117
  %v120 = vunpack.c.l.s4 1966171168
  %v121 = vunpack.c.0.s8 %v120
  %v122 = vlaneseq
  %v123 = vshrl.u32 %v122, 7
  %v124 = vsub.s32 %v121, %v123
  %v125 = vrot.slane %v111, %v124
  %vm128 = vcmask 253952
  %129 = vst.msk [vmem:[%s3] sm:$0x1] %vm128, %v118
  %130 = vst.msk [vmem:[%s3 + $0x8] sm:$0x1] %vm128, %v125
  %s131 = scalar_lea.vmem %s0, 2
  %v132 = vld [vmem:[%s131] sm:$0x3]
  %v133 = vld [vmem:[%s2] sm:$0xff]
  %v134 = vld [vmem:[%s2 + $0x8] sm:$0xff]
  %v135 = vld [vmem:[%s2 + $0x10] sm:$0xff]
  %v136 = vld [vmem:[%s2 + $0x18] sm:$0xff]
  %v137 = vsel %vm27, %v102, 0
  %139 = vmatprep.subr.mxu0 0.0
  %140 = vmatpush1.msra.mxu0 0.0
  %141 = vmatprep.subr.mxu0 0.0
  %142 = vmatpush1.msra.mxu0 0.0
  %143 = vmatprep.subr.mxu0 0.0
  %144 = vmatpush1.msra.mxu0 0.0
  %145 = vmatprep.subr.mxu0 0.0
  %146 = vmatpush1.msra.mxu0 0.0
  %147 = vmatprep.subr.mxu0 0.0
  %148 = vmatpush1.msra.mxu0 0.0
  %149 = vmatprep.subr.mxu0 0.0
  %150 = vmatpush1.msra.mxu0 0.0
  %151 = vmatprep.subr.mxu0 0.0
  %152 = vmatpush1.msra.mxu0 0.0
  %153 = vmatprep.subr.mxu0 0.0
  %154 = vmatpush1.msra.mxu0 0.0
  %155 = vmatprep.subr.mxu0 0.0
  %156 = vmatpush1.msra.mxu0 0.0
  %157 = vmatprep.subr.mxu0 0.0
  %158 = vmatpush1.msra.mxu0 0.0
  %159 = vmatprep.subr.mxu0 0.0
  %160 = vmatpush1.msra.mxu0 0.0
  %161 = vmatprep.subr.mxu0 0.0
  %162 = vmatpush1.msra.mxu0 0.0
  %163 = vmatprep.subr.mxu0 0.0
  %164 = vmatpush1.msra.mxu0 %v136
  %165 = vmatprep.subr.mxu0 0.0
  %166 = vmatpush1.msra.mxu0 %v135
  %167 = vmatprep.subr.mxu0 0.0
  %168 = vmatpush1.msra.mxu0 %v134
  %169 = vmatprep.subr.mxu0 0.0
  %170 = vmatpush1.msra.mxu0 %v133
  %171 = vmatprep.subr.mxu0 0.0
  %172 = vmatpush2.msra.mxu0 0.0
  %173 = vmatprep.subr.mxu0 0.0
  %174 = vmatpush2.msra.mxu0 0.0
  %175 = vmatprep.subr.mxu0 0.0
  %176 = vmatpush2.msra.mxu0 0.0
  %177 = vmatprep.subr.mxu0 0.0
  %178 = vmatpush2.msra.mxu0 0.0
  %179 = vmatprep.subr.mxu0 0.0
  %180 = vmatpush2.msra.mxu0 0.0
  %181 = vmatprep.subr.mxu0 0.0
  %182 = vmatpush2.msra.mxu0 0.0
  %183 = vmatprep.subr.mxu0 0.0
  %184 = vmatpush2.msra.mxu0 0.0
  %185 = vmatprep.subr.mxu0 0.0
  %186 = vmatpush2.msra.mxu0 0.0
  %187 = vmatprep.subr.mxu0 0.0
  %188 = vmatpush2.msra.mxu0 0.0
  %189 = vmatprep.subr.mxu0 0.0
  %190 = vmatpush2.msra.mxu0 0.0
  %191 = vmatprep.subr.mxu0 0.0
  %192 = vmatpush2.msra.mxu0 0.0
  %193 = vmatprep.subr.mxu0 0.0
  %194 = vmatpush2.msra.mxu0 0.0
  %195 = vmatprep.subr.mxu0 0.0
  %196 = vmatpush2.msra.mxu0 0.0
  %197 = vmatprep.subr.mxu0 0.0
  %198 = vmatpush2.msra.mxu0 0.0
  %199 = vmatprep.subr.mxu0 0.0
  %200 = vmatpush2.msra.mxu0 0.0
  %201 = vmatprep.subr.mxu0 0.0
  %202 = vmatpush2.msra.mxu0 0.0
  %203 = vmatprep.mubr.f32.mxu0 0.0
  %204 = vmatmul.mubr.f32.gmra.mxu0 %v137
  %v205 = vpop.f32.mrf.mxu0
  %v206 = vadd.f32 0.0, %v205
  %v207 = vpop.f32.mrf.mxu0
  %208 = vdwg.mxu0
  %v209 = vadd.f32 %v132, %v206
  %v210 = vtanh.pop %v209
  %v213 = vunpack.c.l.s4 1966171168
  %v214 = vunpack.c.0.s8 %v213
  %v215 = vlaneseq
  %v216 = vshrl.u32 %v215, 7
  %v217 = vsub.s32 %v214, %v216
  %v218 = vrot.slane %v210, %v217
  %v219 = vcombine.high %v218, %v218
  %v221 = vunpack.c.l.s4 1966171168
  %v222 = vunpack.c.0.s8 %v221
  %v223 = vlaneseq
  %v224 = vshrl.u32 %v223, 7
  %v225 = vsub.s32 %v222, %v224
  %v226 = vrot.slane %v218, %v225
  %v228 = vunpack.c.l.s4 1966171168
  %v229 = vunpack.c.0.s8 %v228
  %v230 = vlaneseq
  %v231 = vshrl.u32 %v230, 7
  %v232 = vsub.s32 %v229, %v231
  %v233 = vrot.slane %v219, %v232
  %236 = vst.msk [vmem:[%s3 + $0x1] sm:$0x1] %vm128, %v226
  %237 = vst.msk [vmem:[%s3 + $0x9] sm:$0x1] %vm128, %v233
  %s238 = scalar_lea.vmem %s0, 4
  %v239 = vld [vmem:[%s238] sm:$0x3]
  %v240 = vld [vmem:[%s2] sm:$0xff]
  %v241 = vld [vmem:[%s2 + $0x8] sm:$0xff]
  %v242 = vld [vmem:[%s2 + $0x10] sm:$0xff]
  %v243 = vld [vmem:[%s2 + $0x18] sm:$0xff]
  %v244 = vsel %vm27, %v210, 0
  %246 = vmatprep.subr.mxu0 0.0
  %247 = vmatpush1.msra.mxu0 0.0
  %248 = vmatprep.subr.mxu0 0.0
  %249 = vmatpush1.msra.mxu0 0.0
  %250 = vmatprep.subr.mxu0 0.0
  %251 = vmatpush1.msra.mxu0 0.0
  %252 = vmatprep.subr.mxu0 0.0
  %253 = vmatpush1.msra.mxu0 0.0
  %254 = vmatprep.subr.mxu0 0.0
  %255 = vmatpush1.msra.mxu0 0.0
  %256 = vmatprep.subr.mxu0 0.0
  %257 = vmatpush1.msra.mxu0 0.0
  %258 = vmatprep.subr.mxu0 0.0
  %259 = vmatpush1.msra.mxu0 0.0
  %260 = vmatprep.subr.mxu0 0.0
  %261 = vmatpush1.msra.mxu0 0.0
  %262 = vmatprep.subr.mxu0 0.0
  %263 = vmatpush1.msra.mxu0 0.0
  %264 = vmatprep.subr.mxu0 0.0
  %265 = vmatpush1.msra.mxu0 0.0
  %266 = vmatprep.subr.mxu0 0.0
  %267 = vmatpush1.msra.mxu0 0.0
  %268 = vmatprep.subr.mxu0 0.0
  %269 = vmatpush1.msra.mxu0 0.0
  %270 = vmatprep.subr.mxu0 0.0
  %271 = vmatpush1.msra.mxu0 %v243
  %272 = vmatprep.subr.mxu0 0.0
  %273 = vmatpush1.msra.mxu0 %v242
  %274 = vmatprep.subr.mxu0 0.0
  %275 = vmatpush1.msra.mxu0 %v241
  %276 = vmatprep.subr.mxu0 0.0
  %277 = vmatpush1.msra.mxu0 %v240
  %278 = vmatprep.subr.mxu0 0.0
  %279 = vmatpush2.msra.mxu0 0.0
  %280 = vmatprep.subr.mxu0 0.0
  %281 = vmatpush2.msra.mxu0 0.0
  %282 = vmatprep.subr.mxu0 0.0
  %283 = vmatpush2.msra.mxu0 0.0
  %284 = vmatprep.subr.mxu0 0.0
  %285 = vmatpush2.msra.mxu0 0.0
  %286 = vmatprep.subr.mxu0 0.0
  %287 = vmatpush2.msra.mxu0 0.0
  %288 = vmatprep.subr.mxu0 0.0
  %289 = vmatpush2.msra.mxu0 0.0
  %290 = vmatprep.subr.mxu0 0.0
  %291 = vmatpush2.msra.mxu0 0.0
  %292 = vmatprep.subr.mxu0 0.0
  %293 = vmatpush2.msra.mxu0 0.0
  %294 = vmatprep.subr.mxu0 0.0
  %295 = vmatpush2.msra.mxu0 0.0
  %296 = vmatprep.subr.mxu0 0.0
  %297 = vmatpush2.msra.mxu0 0.0
  %298 = vmatprep.subr.mxu0 0.0
  %299 = vmatpush2.msra.mxu0 0.0
  %300 = vmatprep.subr.mxu0 0.0
  %301 = vmatpush2.msra.mxu0 0.0
  %302 = vmatprep.subr.mxu0 0.0
  %303 = vmatpush2.msra.mxu0 0.0
  %304 = vmatprep.subr.mxu0 0.0
  %305 = vmatpush2.msra.mxu0 0.0
  %306 = vmatprep.subr.mxu0 0.0
  %307 = vmatpush2.msra.mxu0 0.0
  %308 = vmatprep.subr.mxu0 0.0
  %309 = vmatpush2.msra.mxu0 0.0
  %310 = vmatprep.mubr.f32.mxu0 0.0
  %311 = vmatmul.mubr.f32.gmra.mxu0 %v244
  %v312 = vpop.f32.mrf.mxu0
  %v313 = vadd.f32 0.0, %v312
  %v314 = vpop.f32.mrf.mxu0
  %315 = vdwg.mxu0
  %v316 = vadd.f32 %v239, %v313
  %v317 = vtanh.pop %v316
  %v320 = vunpack.c.l.s4 1966171168
  %v321 = vunpack.c.0.s8 %v320
  %v322 = vlaneseq
  %v323 = vshrl.u32 %v322, 7
  %v324 = vsub.s32 %v321, %v323
  %v325 = vrot.slane %v317, %v324
  %v326 = vcombine.high %v325, %v325
  %v328 = vunpack.c.l.s4 1966171168
  %v329 = vunpack.c.0.s8 %v328
  %v330 = vlaneseq
  %v331 = vshrl.u32 %v330, 7
  %v332 = vsub.s32 %v329, %v331
  %v333 = vrot.slane %v325, %v332
  %v335 = vunpack.c.l.s4 1966171168
  %v336 = vunpack.c.0.s8 %v335
  %v337 = vlaneseq
  %v338 = vshrl.u32 %v337, 7
  %v339 = vsub.s32 %v336, %v338
  %v340 = vrot.slane %v326, %v339
  %343 = vst.msk [vmem:[%s3 + $0x2] sm:$0x1] %vm128, %v333
  %344 = vst.msk [vmem:[%s3 + $0xa] sm:$0x1] %vm128, %v340
  %s345 = scalar_lea.vmem %s0, 6
  %v346 = vld [vmem:[%s345] sm:$0x3]
  %v347 = vld [vmem:[%s2] sm:$0xff]
  %v348 = vld [vmem:[%s2 + $0x8] sm:$0xff]
  %v349 = vld [vmem:[%s2 + $0x10] sm:$0xff]
  %v350 = vld [vmem:[%s2 + $0x18] sm:$0xff]
  %v351 = vsel %vm27, %v317, 0
  %353 = vmatprep.subr.mxu0 0.0
  %354 = vmatpush1.msra.mxu0 0.0
  %355 = vmatprep.subr.mxu0 0.0
  %356 = vmatpush1.msra.mxu0 0.0
  %357 = vmatprep.subr.mxu0 0.0
  %358 = vmatpush1.msra.mxu0 0.0
  %359 = vmatprep.subr.mxu0 0.0
  %360 = vmatpush1.msra.mxu0 0.0
  %361 = vmatprep.subr.mxu0 0.0
  %362 = vmatpush1.msra.mxu0 0.0
  %363 = vmatprep.subr.mxu0 0.0
  %364 = vmatpush1.msra.mxu0 0.0
  %365 = vmatprep.subr.mxu0 0.0
  %366 = vmatpush1.msra.mxu0 0.0
  %367 = vmatprep.subr.mxu0 0.0
  %368 = vmatpush1.msra.mxu0 0.0
  %369 = vmatprep.subr.mxu0 0.0
  %370 = vmatpush1.msra.mxu0 0.0
  %371 = vmatprep.subr.mxu0 0.0
  %372 = vmatpush1.msra.mxu0 0.0
  %373 = vmatprep.subr.mxu0 0.0
  %374 = vmatpush1.msra.mxu0 0.0
  %375 = vmatprep.subr.mxu0 0.0
  %376 = vmatpush1.msra.mxu0 0.0
  %377 = vmatprep.subr.mxu0 0.0
  %378 = vmatpush1.msra.mxu0 %v350
  %379 = vmatprep.subr.mxu0 0.0
  %380 = vmatpush1.msra.mxu0 %v349
  %381 = vmatprep.subr.mxu0 0.0
  %382 = vmatpush1.msra.mxu0 %v348
  %383 = vmatprep.subr.mxu0 0.0
  %384 = vmatpush1.msra.mxu0 %v347
  %385 = vmatprep.subr.mxu0 0.0
  %386 = vmatpush2.msra.mxu0 0.0
  %387 = vmatprep.subr.mxu0 0.0
  %388 = vmatpush2.msra.mxu0 0.0
  %389 = vmatprep.subr.mxu0 0.0
  %390 = vmatpush2.msra.mxu0 0.0
  %391 = vmatprep.subr.mxu0 0.0
  %392 = vmatpush2.msra.mxu0 0.0
  %393 = vmatprep.subr.mxu0 0.0
  %394 = vmatpush2.msra.mxu0 0.0
  %395 = vmatprep.subr.mxu0 0.0
  %396 = vmatpush2.msra.mxu0 0.0
  %397 = vmatprep.subr.mxu0 0.0
  %398 = vmatpush2.msra.mxu0 0.0
  %399 = vmatprep.subr.mxu0 0.0
  %400 = vmatpush2.msra.mxu0 0.0
  %401 = vmatprep.subr.mxu0 0.0
  %402 = vmatpush2.msra.mxu0 0.0
  %403 = vmatprep.subr.mxu0 0.0
  %404 = vmatpush2.msra.mxu0 0.0
  %405 = vmatprep.subr.mxu0 0.0
  %406 = vmatpush2.msra.mxu0 0.0
  %407 = vmatprep.subr.mxu0 0.0
  %408 = vmatpush2.msra.mxu0 0.0
  %409 = vmatprep.subr.mxu0 0.0
  %410 = vmatpush2.msra.mxu0 0.0
  %411 = vmatprep.subr.mxu0 0.0
  %412 = vmatpush2.msra.mxu0 0.0
  %413 = vmatprep.subr.mxu0 0.0
  %414 = vmatpush2.msra.mxu0 0.0
  %415 = vmatprep.subr.mxu0 0.0
  %416 = vmatpush2.msra.mxu0 0.0
  %417 = vmatprep.mubr.f32.mxu0 0.0
  %418 = vmatmul.mubr.f32.gmra.mxu0 %v351
  %v419 = vpop.f32.mrf.mxu0
  %v420 = vadd.f32 0.0, %v419
  %v421 = vpop.f32.mrf.mxu0
  %422 = vdwg.mxu0
  %v423 = vadd.f32 %v346, %v420
  %v424 = vtanh.pop %v423
  %v427 = vunpack.c.l.s4 1966171168
  %v428 = vunpack.c.0.s8 %v427
  %v429 = vlaneseq
  %v430 = vshrl.u32 %v429, 7
  %v431 = vsub.s32 %v428, %v430
  %v432 = vrot.slane %v424, %v431
  %v433 = vcombine.high %v432, %v432
  %v435 = vunpack.c.l.s4 1966171168
  %v436 = vunpack.c.0.s8 %v435
  %v437 = vlaneseq
  %v438 = vshrl.u32 %v437, 7
  %v439 = vsub.s32 %v436, %v438
  %v440 = vrot.slane %v432, %v439
  %v442 = vunpack.c.l.s4 1966171168
  %v443 = vunpack.c.0.s8 %v442
  %v444 = vlaneseq
  %v445 = vshrl.u32 %v444, 7
  %v446 = vsub.s32 %v443, %v445
  %v447 = vrot.slane %v433, %v446
  %450 = vst.msk [vmem:[%s3 + $0x3] sm:$0x1] %vm128, %v440
  %451 = vst.msk [vmem:[%s3 + $0xb] sm:$0x1] %vm128, %v447
  %s452 = scalar_lea.vmem %s0, 8
  %v453 = vld [vmem:[%s452] sm:$0x3]
  %v454 = vld [vmem:[%s2] sm:$0xff]
  %v455 = vld [vmem:[%s2 + $0x8] sm:$0xff]
  %v456 = vld [vmem:[%s2 + $0x10] sm:$0xff]
  %v457 = vld [vmem:[%s2 + $0x18] sm:$0xff]
  %v458 = vsel %vm27, %v424, 0
  %460 = vmatprep.subr.mxu0 0.0
  %461 = vmatpush1.msra.mxu0 0.0
  %462 = vmatprep.subr.mxu0 0.0
  %463 = vmatpush1.msra.mxu0 0.0
  %464 = vmatprep.subr.mxu0 0.0
  %465 = vmatpush1.msra.mxu0 0.0
  %466 = vmatprep.subr.mxu0 0.0
  %467 = vmatpush1.msra.mxu0 0.0
  %468 = vmatprep.subr.mxu0 0.0
  %469 = vmatpush1.msra.mxu0 0.0
  %470 = vmatprep.subr.mxu0 0.0
  %471 = vmatpush1.msra.mxu0 0.0
  %472 = vmatprep.subr.mxu0 0.0
  %473 = vmatpush1.msra.mxu0 0.0
  %474 = vmatprep.subr.mxu0 0.0
  %475 = vmatpush1.msra.mxu0 0.0
  %476 = vmatprep.subr.mxu0 0.0
  %477 = vmatpush1.msra.mxu0 0.0
  %478 = vmatprep.subr.mxu0 0.0
  %479 = vmatpush1.msra.mxu0 0.0
  %480 = vmatprep.subr.mxu0 0.0
  %481 = vmatpush1.msra.mxu0 0.0
  %482 = vmatprep.subr.mxu0 0.0
  %483 = vmatpush1.msra.mxu0 0.0
  %484 = vmatprep.subr.mxu0 0.0
  %485 = vmatpush1.msra.mxu0 %v457
  %486 = vmatprep.subr.mxu0 0.0
  %487 = vmatpush1.msra.mxu0 %v456
  %488 = vmatprep.subr.mxu0 0.0
  %489 = vmatpush1.msra.mxu0 %v455
  %490 = vmatprep.subr.mxu0 0.0
  %491 = vmatpush1.msra.mxu0 %v454
  %492 = vmatprep.subr.mxu0 0.0
  %493 = vmatpush2.msra.mxu0 0.0
  %494 = vmatprep.subr.mxu0 0.0
  %495 = vmatpush2.msra.mxu0 0.0
  %496 = vmatprep.subr.mxu0 0.0
  %497 = vmatpush2.msra.mxu0 0.0
  %498 = vmatprep.subr.mxu0 0.0
  %499 = vmatpush2.msra.mxu0 0.0
  %500 = vmatprep.subr.mxu0 0.0
  %501 = vmatpush2.msra.mxu0 0.0
  %502 = vmatprep.subr.mxu0 0.0
  %503 = vmatpush2.msra.mxu0 0.0
  %504 = vmatprep.subr.mxu0 0.0
  %505 = vmatpush2.msra.mxu0 0.0
  %506 = vmatprep.subr.mxu0 0.0
  %507 = vmatpush2.msra.mxu0 0.0
  %508 = vmatprep.subr.mxu0 0.0
  %509 = vmatpush2.msra.mxu0 0.0
  %510 = vmatprep.subr.mxu0 0.0
  %511 = vmatpush2.msra.mxu0 0.0
  %512 = vmatprep.subr.mxu0 0.0
  %513 = vmatpush2.msra.mxu0 0.0
  %514 = vmatprep.subr.mxu0 0.0
  %515 = vmatpush2.msra.mxu0 0.0
  %516 = vmatprep.subr.mxu0 0.0
  %517 = vmatpush2.msra.mxu0 0.0
  %518 = vmatprep.subr.mxu0 0.0
  %519 = vmatpush2.msra.mxu0 0.0
  %520 = vmatprep.subr.mxu0 0.0
  %521 = vmatpush2.msra.mxu0 0.0
  %522 = vmatprep.subr.mxu0 0.0
  %523 = vmatpush2.msra.mxu0 0.0
  %524 = vmatprep.mubr.f32.mxu0 0.0
  %525 = vmatmul.mubr.f32.gmra.mxu0 %v458
  %v526 = vpop.f32.mrf.mxu0
  %v527 = vadd.f32 0.0, %v526
  %v528 = vpop.f32.mrf.mxu0
  %529 = vdwg.mxu0
  %v530 = vadd.f32 %v453, %v527
  %v531 = vtanh.pop %v530
  %v534 = vunpack.c.l.s4 1966171168
  %v535 = vunpack.c.0.s8 %v534
  %v536 = vlaneseq
  %v537 = vshrl.u32 %v536, 7
  %v538 = vsub.s32 %v535, %v537
  %v539 = vrot.slane %v531, %v538
  %v540 = vcombine.high %v539, %v539
  %v542 = vunpack.c.l.s4 1966171168
  %v543 = vunpack.c.0.s8 %v542
  %v544 = vlaneseq
  %v545 = vshrl.u32 %v544, 7
  %v546 = vsub.s32 %v543, %v545
  %v547 = vrot.slane %v539, %v546
  %v549 = vunpack.c.l.s4 1966171168
  %v550 = vunpack.c.0.s8 %v549
  %v551 = vlaneseq
  %v552 = vshrl.u32 %v551, 7
  %v553 = vsub.s32 %v550, %v552
  %v554 = vrot.slane %v540, %v553
  %557 = vst.msk [vmem:[%s3 + $0x4] sm:$0x1] %vm128, %v547
  %558 = vst.msk [vmem:[%s3 + $0xc] sm:$0x1] %vm128, %v554
  %s559 = scalar_lea.vmem %s0, 10
  %v560 = vld [vmem:[%s559] sm:$0x3]
  %v561 = vld [vmem:[%s2] sm:$0xff]
  %v562 = vld [vmem:[%s2 + $0x8] sm:$0xff]
  %v563 = vld [vmem:[%s2 + $0x10] sm:$0xff]
  %v564 = vld [vmem:[%s2 + $0x18] sm:$0xff]
  %v565 = vsel %vm27, %v531, 0
  %567 = vmatprep.subr.mxu0 0.0
  %568 = vmatpush1.msra.mxu0 0.0
  %569 = vmatprep.subr.mxu0 0.0
  %570 = vmatpush1.msra.mxu0 0.0
  %571 = vmatprep.subr.mxu0 0.0
  %572 = vmatpush1.msra.mxu0 0.0
  %573 = vmatprep.subr.mxu0 0.0
  %574 = vmatpush1.msra.mxu0 0.0
  %575 = vmatprep.subr.mxu0 0.0
  %576 = vmatpush1.msra.mxu0 0.0
  %577 = vmatprep.subr.mxu0 0.0
  %578 = vmatpush1.msra.mxu0 0.0
  %579 = vmatprep.subr.mxu0 0.0
  %580 = vmatpush1.msra.mxu0 0.0
  %581 = vmatprep.subr.mxu0 0.0
  %582 = vmatpush1.msra.mxu0 0.0
  %583 = vmatprep.subr.mxu0 0.0
  %584 = vmatpush1.msra.mxu0 0.0
  %585 = vmatprep.subr.mxu0 0.0
  %586 = vmatpush1.msra.mxu0 0.0
  %587 = vmatprep.subr.mxu0 0.0
  %588 = vmatpush1.msra.mxu0 0.0
  %589 = vmatprep.subr.mxu0 0.0
  %590 = vmatpush1.msra.mxu0 0.0
  %591 = vmatprep.subr.mxu0 0.0
  %592 = vmatpush1.msra.mxu0 %v564
  %593 = vmatprep.subr.mxu0 0.0
  %594 = vmatpush1.msra.mxu0 %v563
  %595 = vmatprep.subr.mxu0 0.0
  %596 = vmatpush1.msra.mxu0 %v562
  %597 = vmatprep.subr.mxu0 0.0
  %598 = vmatpush1.msra.mxu0 %v561
  %599 = vmatprep.subr.mxu0 0.0
  %600 = vmatpush2.msra.mxu0 0.0
  %601 = vmatprep.subr.mxu0 0.0
  %602 = vmatpush2.msra.mxu0 0.0
  %603 = vmatprep.subr.mxu0 0.0
  %604 = vmatpush2.msra.mxu0 0.0
  %605 = vmatprep.subr.mxu0 0.0
  %606 = vmatpush2.msra.mxu0 0.0
  %607 = vmatprep.subr.mxu0 0.0
  %608 = vmatpush2.msra.mxu0 0.0
  %609 = vmatprep.subr.mxu0 0.0
  %610 = vmatpush2.msra.mxu0 0.0
  %611 = vmatprep.subr.mxu0 0.0
  %612 = vmatpush2.msra.mxu0 0.0
  %613 = vmatprep.subr.mxu0 0.0
  %614 = vmatpush2.msra.mxu0 0.0
  %615 = vmatprep.subr.mxu0 0.0
  %616 = vmatpush2.msra.mxu0 0.0
  %617 = vmatprep.subr.mxu0 0.0
  %618 = vmatpush2.msra.mxu0 0.0
  %619 = vmatprep.subr.mxu0 0.0
  %620 = vmatpush2.msra.mxu0 0.0
  %621 = vmatprep.subr.mxu0 0.0
  %622 = vmatpush2.msra.mxu0 0.0
  %623 = vmatprep.subr.mxu0 0.0
  %624 = vmatpush2.msra.mxu0 0.0
  %625 = vmatprep.subr.mxu0 0.0
  %626 = vmatpush2.msra.mxu0 0.0
  %627 = vmatprep.subr.mxu0 0.0
  %628 = vmatpush2.msra.mxu0 0.0
  %629 = vmatprep.subr.mxu0 0.0
  %630 = vmatpush2.msra.mxu0 0.0
  %631 = vmatprep.mubr.f32.mxu0 0.0
  %632 = vmatmul.mubr.f32.gmra.mxu0 %v565
  %v633 = vpop.f32.mrf.mxu0
  %v634 = vadd.f32 0.0, %v633
  %v635 = vpop.f32.mrf.mxu0
  %636 = vdwg.mxu0
  %v637 = vadd.f32 %v560, %v634
  %v638 = vtanh.pop %v637
  %v641 = vunpack.c.l.s4 1966171168
  %v642 = vunpack.c.0.s8 %v641
  %v643 = vlaneseq
  %v644 = vshrl.u32 %v643, 7
  %v645 = vsub.s32 %v642, %v644
  %v646 = vrot.slane %v638, %v645
  %v647 = vcombine.high %v646, %v646
  %v649 = vunpack.c.l.s4 1966171168
  %v650 = vunpack.c.0.s8 %v649
  %v651 = vlaneseq
  %v652 = vshrl.u32 %v651, 7
  %v653 = vsub.s32 %v650, %v652
  %v654 = vrot.slane %v646, %v653
  %v656 = vunpack.c.l.s4 1966171168
  %v657 = vunpack.c.0.s8 %v656
  %v658 = vlaneseq
  %v659 = vshrl.u32 %v658, 7
  %v660 = vsub.s32 %v657, %v659
  %v661 = vrot.slane %v647, %v660
  %664 = vst.msk [vmem:[%s3 + $0x5] sm:$0x1] %vm128, %v654
  %665 = vst.msk [vmem:[%s3 + $0xd] sm:$0x1] %vm128, %v661
  %s666 = scalar_lea.vmem %s0, 12
  %v667 = vld [vmem:[%s666] sm:$0x3]
  %v668 = vld [vmem:[%s2] sm:$0xff]
  %v669 = vld [vmem:[%s2 + $0x8] sm:$0xff]
  %v670 = vld [vmem:[%s2 + $0x10] sm:$0xff]
  %v671 = vld [vmem:[%s2 + $0x18] sm:$0xff]
  %v672 = vsel %vm27, %v638, 0
  %674 = vmatprep.subr.mxu0 0.0
  %675 = vmatpush1.msra.mxu0 0.0
  %676 = vmatprep.subr.mxu0 0.0
  %677 = vmatpush1.msra.mxu0 0.0
  %678 = vmatprep.subr.mxu0 0.0
  %679 = vmatpush1.msra.mxu0 0.0
  %680 = vmatprep.subr.mxu0 0.0
  %681 = vmatpush1.msra.mxu0 0.0
  %682 = vmatprep.subr.mxu0 0.0
  %683 = vmatpush1.msra.mxu0 0.0
  %684 = vmatprep.subr.mxu0 0.0
  %685 = vmatpush1.msra.mxu0 0.0
  %686 = vmatprep.subr.mxu0 0.0
  %687 = vmatpush1.msra.mxu0 0.0
  %688 = vmatprep.subr.mxu0 0.0
  %689 = vmatpush1.msra.mxu0 0.0
  %690 = vmatprep.subr.mxu0 0.0
  %691 = vmatpush1.msra.mxu0 0.0
  %692 = vmatprep.subr.mxu0 0.0
  %693 = vmatpush1.msra.mxu0 0.0
  %694 = vmatprep.subr.mxu0 0.0
  %695 = vmatpush1.msra.mxu0 0.0
  %696 = vmatprep.subr.mxu0 0.0
  %697 = vmatpush1.msra.mxu0 0.0
  %698 = vmatprep.subr.mxu0 0.0
  %699 = vmatpush1.msra.mxu0 %v671
  %700 = vmatprep.subr.mxu0 0.0
  %701 = vmatpush1.msra.mxu0 %v670
  %702 = vmatprep.subr.mxu0 0.0
  %703 = vmatpush1.msra.mxu0 %v669
  %704 = vmatprep.subr.mxu0 0.0
  %705 = vmatpush1.msra.mxu0 %v668
  %706 = vmatprep.subr.mxu0 0.0
  %707 = vmatpush2.msra.mxu0 0.0
  %708 = vmatprep.subr.mxu0 0.0
  %709 = vmatpush2.msra.mxu0 0.0
  %710 = vmatprep.subr.mxu0 0.0
  %711 = vmatpush2.msra.mxu0 0.0
  %712 = vmatprep.subr.mxu0 0.0
  %713 = vmatpush2.msra.mxu0 0.0
  %714 = vmatprep.subr.mxu0 0.0
  %715 = vmatpush2.msra.mxu0 0.0
  %716 = vmatprep.subr.mxu0 0.0
  %717 = vmatpush2.msra.mxu0 0.0
  %718 = vmatprep.subr.mxu0 0.0
  %719 = vmatpush2.msra.mxu0 0.0
  %720 = vmatprep.subr.mxu0 0.0
  %721 = vmatpush2.msra.mxu0 0.0
  %722 = vmatprep.subr.mxu0 0.0
  %723 = vmatpush2.msra.mxu0 0.0
  %724 = vmatprep.subr.mxu0 0.0
  %725 = vmatpush2.msra.mxu0 0.0
  %726 = vmatprep.subr.mxu0 0.0
  %727 = vmatpush2.msra.mxu0 0.0
  %728 = vmatprep.subr.mxu0 0.0
  %729 = vmatpush2.msra.mxu0 0.0
  %730 = vmatprep.subr.mxu0 0.0
  %731 = vmatpush2.msra.mxu0 0.0
  %732 = vmatprep.subr.mxu0 0.0
  %733 = vmatpush2.msra.mxu0 0.0
  %734 = vmatprep.subr.mxu0 0.0
  %735 = vmatpush2.msra.mxu0 0.0
  %736 = vmatprep.subr.mxu0 0.0
  %737 = vmatpush2.msra.mxu0 0.0
  %738 = vmatprep.mubr.f32.mxu0 0.0
  %739 = vmatmul.mubr.f32.gmra.mxu0 %v672
  %v740 = vpop.f32.mrf.mxu0
  %v741 = vadd.f32 0.0, %v740
  %v742 = vpop.f32.mrf.mxu0
  %743 = vdwg.mxu0
  %v744 = vadd.f32 %v667, %v741
  %v745 = vtanh.pop %v744
  %v748 = vunpack.c.l.s4 1966171168
  %v749 = vunpack.c.0.s8 %v748
  %v750 = vlaneseq
  %v751 = vshrl.u32 %v750, 7
  %v752 = vsub.s32 %v749, %v751
  %v753 = vrot.slane %v745, %v752
  %v754 = vcombine.high %v753, %v753
  %v756 = vunpack.c.l.s4 1966171168
  %v757 = vunpack.c.0.s8 %v756
  %v758 = vlaneseq
  %v759 = vshrl.u32 %v758, 7
  %v760 = vsub.s32 %v757, %v759
  %v761 = vrot.slane %v753, %v760
  %v763 = vunpack.c.l.s4 1966171168
  %v764 = vunpack.c.0.s8 %v763
  %v765 = vlaneseq
  %v766 = vshrl.u32 %v765, 7
  %v767 = vsub.s32 %v764, %v766
  %v768 = vrot.slane %v754, %v767
  %771 = vst.msk [vmem:[%s3 + $0x6] sm:$0x1] %vm128, %v761
  %772 = vst.msk [vmem:[%s3 + $0xe] sm:$0x1] %vm128, %v768
  %s773 = scalar_lea.vmem %s0, 14
  %v774 = vld [vmem:[%s773] sm:$0x3]
  %v775 = vld [vmem:[%s2] sm:$0xff]
  %v776 = vld [vmem:[%s2 + $0x8] sm:$0xff]
  %v777 = vld [vmem:[%s2 + $0x10] sm:$0xff]
  %v778 = vld [vmem:[%s2 + $0x18] sm:$0xff]
  %v779 = vsel %vm27, %v745, 0
  %781 = vmatprep.subr.mxu0 0.0
  %782 = vmatpush1.msra.mxu0 0.0
  %783 = vmatprep.subr.mxu0 0.0
  %784 = vmatpush1.msra.mxu0 0.0
  %785 = vmatprep.subr.mxu0 0.0
  %786 = vmatpush1.msra.mxu0 0.0
  %787 = vmatprep.subr.mxu0 0.0
  %788 = vmatpush1.msra.mxu0 0.0
  %789 = vmatprep.subr.mxu0 0.0
  %790 = vmatpush1.msra.mxu0 0.0
  %791 = vmatprep.subr.mxu0 0.0
  %792 = vmatpush1.msra.mxu0 0.0
  %793 = vmatprep.subr.mxu0 0.0
  %794 = vmatpush1.msra.mxu0 0.0
  %795 = vmatprep.subr.mxu0 0.0
  %796 = vmatpush1.msra.mxu0 0.0
  %797 = vmatprep.subr.mxu0 0.0
  %798 = vmatpush1.msra.mxu0 0.0
  %799 = vmatprep.subr.mxu0 0.0
  %800 = vmatpush1.msra.mxu0 0.0
  %801 = vmatprep.subr.mxu0 0.0
  %802 = vmatpush1.msra.mxu0 0.0
  %803 = vmatprep.subr.mxu0 0.0
  %804 = vmatpush1.msra.mxu0 0.0
  %805 = vmatprep.subr.mxu0 0.0
  %806 = vmatpush1.msra.mxu0 %v778
  %807 = vmatprep.subr.mxu0 0.0
  %808 = vmatpush1.msra.mxu0 %v777
  %809 = vmatprep.subr.mxu0 0.0
  %810 = vmatpush1.msra.mxu0 %v776
  %811 = vmatprep.subr.mxu0 0.0
  %812 = vmatpush1.msra.mxu0 %v775
  %813 = vmatprep.subr.mxu0 0.0
  %814 = vmatpush2.msra.mxu0 0.0
  %815 = vmatprep.subr.mxu0 0.0
  %816 = vmatpush2.msra.mxu0 0.0
  %817 = vmatprep.subr.mxu0 0.0
  %818 = vmatpush2.msra.mxu0 0.0
  %819 = vmatprep.subr.mxu0 0.0
  %820 = vmatpush2.msra.mxu0 0.0
  %821 = vmatprep.subr.mxu0 0.0
  %822 = vmatpush2.msra.mxu0 0.0
  %823 = vmatprep.subr.mxu0 0.0
  %824 = vmatpush2.msra.mxu0 0.0
  %825 = vmatprep.subr.mxu0 0.0
  %826 = vmatpush2.msra.mxu0 0.0
  %827 = vmatprep.subr.mxu0 0.0
  %828 = vmatpush2.msra.mxu0 0.0
  %829 = vmatprep.subr.mxu0 0.0
  %830 = vmatpush2.msra.mxu0 0.0
  %831 = vmatprep.subr.mxu0 0.0
  %832 = vmatpush2.msra.mxu0 0.0
  %833 = vmatprep.subr.mxu0 0.0
  %834 = vmatpush2.msra.mxu0 0.0
  %835 = vmatprep.subr.mxu0 0.0
  %836 = vmatpush2.msra.mxu0 0.0
  %837 = vmatprep.subr.mxu0 0.0
  %838 = vmatpush2.msra.mxu0 0.0
  %839 = vmatprep.subr.mxu0 0.0
  %840 = vmatpush2.msra.mxu0 0.0
  %841 = vmatprep.subr.mxu0 0.0
  %842 = vmatpush2.msra.mxu0 0.0
  %843 = vmatprep.subr.mxu0 0.0
  %844 = vmatpush2.msra.mxu0 0.0
  %845 = vmatprep.mubr.f32.mxu0 0.0
  %846 = vmatmul.mubr.f32.gmra.mxu0 %v779
  %v847 = vpop.f32.mrf.mxu0
  %v848 = vadd.f32 0.0, %v847
  %v849 = vpop.f32.mrf.mxu0
  %850 = vdwg.mxu0
  %v851 = vadd.f32 %v774, %v848
  %v852 = vtanh.pop %v851
  %v855 = vunpack.c.l.s4 1966171168
  %v856 = vunpack.c.0.s8 %v855
  %v857 = vlaneseq
  %v858 = vshrl.u32 %v857, 7
  %v859 = vsub.s32 %v856, %v858
  %v860 = vrot.slane %v852, %v859
  %v861 = vcombine.high %v860, %v860
  %v863 = vunpack.c.l.s4 1966171168
  %v864 = vunpack.c.0.s8 %v863
  %v865 = vlaneseq
  %v866 = vshrl.u32 %v865, 7
  %v867 = vsub.s32 %v864, %v866
  %v868 = vrot.slane %v860, %v867
  %v870 = vunpack.c.l.s4 1966171168
  %v871 = vunpack.c.0.s8 %v870
  %v872 = vlaneseq
  %v873 = vshrl.u32 %v872, 7
  %v874 = vsub.s32 %v871, %v873
  %v875 = vrot.slane %v861, %v874
  %878 = vst.msk [vmem:[%s3 + $0x7] sm:$0x1] %vm128, %v868
  %879 = vst.msk [vmem:[%s3 + $0xf] sm:$0x1] %vm128, %v875
  %vm880 = vcmask 254976
  %881 = vst.msk [vmem:[#allocation2] sm:$0x3] %vm880, %v852
  // Predicated region
  $region18: #{rnn_lm_forward.8} parent=0 // pred_check
    _
  $region19: #{rnn_lm_forward.8} parent=0 // pred_check_branch
    %883 = sbr.rel (0) target = $region21
  $region20: #{rnn_lm_forward.8} parent=0 // pred_region
    _
  $region21: #{rnn_lm_forward.8} parent=0 // pred_fallthru
    _
  // Predicated region
  $region22: #{rnn_lm_forward.8} parent=0 // pred_check
    _
  $region23: #{rnn_lm_forward.8} parent=0 // pred_check_branch
    %885 = sbr.rel (0) target = $region25
  $region24: #{rnn_lm_forward.8} parent=0 // pred_region
    _
  $region25: #{rnn_lm_forward.8} parent=0 // pred_fallthru
    _

</llo_original>
